<compile_context>
chip_gen: v7x
topology: tpu7x:2x2x1
jax: 0.10.0
libtpu: 0.0.40
codegen_flags: <defaults>
</compile_context>

<pallas_src>
import functools

import jax
import jax.numpy as jnp
from jax import lax
from jax.experimental import pallas as pl
from jax.experimental.pallas import tpu as pltpu


# ---------------------------------------------------------------------------
# Fused InvertedResidual kernel
# ---------------------------------------------------------------------------
def make_fused_kernel(H, W, hidden, stride, expand, use_res):
    """Builds the fused (expand -> depthwise 3x3 -> project [+res]) kernel."""
    Ho = (H + 2 - 3) // stride + 1
    Wo = (W + 2 - 3) // stride + 1

    def kernel(*refs):
        it = iter(refs)
        x_ref = next(it)                         # (1, H*W, cin)  channel-last
        if expand:
            we_ref = next(it)                    # (cin, hidden)
            s1_ref = next(it)                    # (1, hidden)
            b1_ref = next(it)                    # (1, hidden)
        wd_ref = next(it)                        # (9, hidden)
        s2_ref = next(it)                        # (1, hidden)
        b2_ref = next(it)                        # (1, hidden)
        wp_ref = next(it)                        # (oup, hidden)  (PyTorch layout)
        s3_ref = next(it)                        # (oup, 1)
        b3_ref = next(it)                        # (oup, 1)
        xcf_ref = next(it) if use_res else None  # (1, cin, H*W)  channel-first
        o_ref = next(it)                         # (1, oup, Ho*Wo)
        hp_ref = next(it)                        # VMEM scratch (H+2, W+2, hidden)

        x2d = x_ref[0]                           # (H*W, cin)

        # --- 1x1 expand conv + BN + ReLU6 (skipped when expand_ratio == 1) ---
        if expand:
            h = jnp.dot(x2d, we_ref[...], preferred_element_type=jnp.float32)
            h = h * s1_ref[...] + b1_ref[...]
            h = jnp.minimum(jnp.maximum(h, 0.0), 6.0)
        else:
            h = x2d

        # --- zero-pad (pad=1) the hidden activation inside VMEM scratch ---
        hp_ref[...] = jnp.zeros_like(hp_ref)
        hp_ref[1:1 + H, 1:1 + W, :] = h.reshape(H, W, hidden)

        # --- 3x3 depthwise conv + BN + ReLU6 (VPU, 9 static taps) ---
        acc = jnp.zeros((Ho, Wo, hidden), jnp.float32)
        for ki in range(3):
            for kj in range(3):
                if stride == 1:
                    win = hp_ref[ki:ki + Ho, kj:kj + Wo, :]
                else:
                    # strided window read straight from VMEM (stride-2 path)
                    win = hp_ref[pl.ds(ki, Ho, stride), pl.ds(kj, Wo, stride), :]
                acc = acc + win * wd_ref[ki * 3 + kj]
        d = acc * s2_ref[0] + b2_ref[0]
        d = jnp.minimum(jnp.maximum(d, 0.0), 6.0)
        d2 = d.reshape(Ho * Wo, hidden)

        # --- 1x1 project conv + BN (+ residual), computed transposed so the
        #     output is channels-first (NCHW-flat) and lane-dense ---
        out_cf = lax.dot_general(
            wp_ref[...], d2, (((1,), (1,)), ((), ())),
            preferred_element_type=jnp.float32)              # (oup, Ho*Wo)
        out_cf = out_cf * s3_ref[...] + b3_ref[...]
        if use_res:
            out_cf = out_cf + xcf_ref[0]
        o_ref[0] = out_cf

    return kernel, Ho, Wo


def _rep2(shape):
    # full-array 2-D block, replicated across the batch grid axis
    return pl.BlockSpec(shape, lambda n: (0, 0))


@functools.partial(jax.jit, static_argnames=("inp", "oup", "stride", "expand_ratio"))
def inverted_residual_forward(x_nchw, kparams, *, inp, oup, stride, expand_ratio):
    assert stride in (1, 2)
    N, C, H, W = x_nchw.shape
    assert C == inp
    hidden = int(inp * expand_ratio)
    expand = expand_ratio != 1
    use_res = (stride == 1) and (inp == oup)

    kernel, Ho, Wo = make_fused_kernel(H, W, hidden, stride, expand, use_res)

    x_flat = x_nchw.reshape(N, C, H * W)             # free reshape (NCHW-flat)
    x_ml = jnp.transpose(x_flat, (0, 2, 1))          # (N, H*W, C) for the expand matmul

    inputs = [x_ml]
    in_specs = [pl.BlockSpec((1, H * W, C), lambda n: (n, 0, 0))]
    if expand:
        inputs += [kparams["w_expand"], kparams["s1"], kparams["b1"]]
        in_specs += [_rep2((inp, hidden)), _rep2((1, hidden)), _rep2((1, hidden))]
    inputs += [kparams["w_dw"], kparams["s2"], kparams["b2"],
               kparams["w_proj"], kparams["s3"], kparams["b3"]]
    in_specs += [_rep2((9, hidden)), _rep2((1, hidden)), _rep2((1, hidden)),
                 _rep2((oup, hidden)), _rep2((oup, 1)), _rep2((oup, 1))]
    if use_res:
        inputs.append(x_flat)                        # channel-first residual, no transpose
        in_specs.append(pl.BlockSpec((1, C, H * W), lambda n: (n, 0, 0)))

    out = pl.pallas_call(
        kernel,
        out_shape=jax.ShapeDtypeStruct((N, oup, Ho * Wo), jnp.float32),
        grid=(N,),
        in_specs=in_specs,
        out_specs=pl.BlockSpec((1, oup, Ho * Wo), lambda n: (n, 0, 0)),
        scratch_shapes=[pltpu.VMEM((H + 2, W + 2, hidden), jnp.float32)],
        compiler_params=pltpu.CompilerParams(
            dimension_semantics=("parallel",),
            vmem_limit_bytes=32 * 1024 * 1024),
    )(*inputs)
    return out.reshape(N, oup, Ho, Wo)               # already NCHW-flat: free reshape


# ---------------------------------------------------------------------------
# Parameters (PyTorch layout) + kernel-layout preparation (BN folding)
# ---------------------------------------------------------------------------
def _bn_params(c, i):
    r = jnp.arange(c, dtype=jnp.float32)
    return dict(
        gamma=1.0 + 0.1 * jnp.sin(0.5 * r + i),
        beta=0.1 * jnp.cos(0.3 * r + i),
        mean=0.1 * jnp.sin(0.7 * r + 2.0 * i),
        var=1.05 + 0.1 * jnp.cos(0.2 * r + i),
    )


def make_torch_params(key, inp, oup, expand_ratio):
    """Parameters in PyTorch layouts (Conv2d OIHW weights + BatchNorm stats)."""
    hidden = int(inp * expand_ratio)
    k1, k2, k3 = jax.random.split(key, 3)
    p = {}
    if expand_ratio != 1:
        p["w_expand_pt"] = 0.1 * jax.random.normal(k1, (hidden, inp, 1, 1), jnp.float32)
        p["bn1"] = _bn_params(hidden, 0)
    p["w_dw_pt"] = 0.1 * jax.random.normal(k2, (hidden, 1, 3, 3), jnp.float32)
    p["bn2"] = _bn_params(hidden, 1)
    p["w_proj_pt"] = 0.1 * jax.random.normal(k3, (oup, hidden, 1, 1), jnp.float32)
    p["bn3"] = _bn_params(oup, 2)
    return p


def _fold_bn(bn, eps=1e-5):
    scale = bn["gamma"] / jnp.sqrt(bn["var"] + eps)
    bias = bn["beta"] - bn["mean"] * scale
    return scale, bias


def prepare_kernel_params(p, inp, oup, expand_ratio):
    """Fold BN into per-channel scale/bias and reshape weights for the kernel."""
    hidden = int(inp * expand_ratio)
    kp = {}
    if expand_ratio != 1:
        kp["w_expand"] = p["w_expand_pt"].reshape(hidden, inp).T      # (inp, hidden)
        s, b = _fold_bn(p["bn1"])
        kp["s1"], kp["b1"] = s.reshape(1, hidden), b.reshape(1, hidden)
    kp["w_dw"] = p["w_dw_pt"].reshape(hidden, 9).T                    # (9, hidden)
    s, b = _fold_bn(p["bn2"])
    kp["s2"], kp["b2"] = s.reshape(1, hidden), b.reshape(1, hidden)
    kp["w_proj"] = p["w_proj_pt"].reshape(oup, hidden)                # (oup, hidden)
    s, b = _fold_bn(p["bn3"])
    kp["s3"], kp["b3"] = s.reshape(oup, 1), b.reshape(oup, 1)
    return kp


# ---------------------------------------------------------------------------
# Pure-JAX reference (lax.conv), matches PyTorch InvertedResidual.forward
# ---------------------------------------------------------------------------
def ref_inverted_residual(x, p, *, inp, oup, stride, expand_ratio, eps=1e-5):
    hidden = int(inp * expand_ratio)
    use_res = (stride == 1) and (inp == oup)
    dn = ("NCHW", "OIHW", "NCHW")
    prec = jax.lax.Precision.HIGHEST

    def bn(y, b):
        sh = (1, -1, 1, 1)
        return ((y - b["mean"].reshape(sh)) / jnp.sqrt(b["var"].reshape(sh) + eps)
                * b["gamma"].reshape(sh) + b["beta"].reshape(sh))

    h = x
    if expand_ratio != 1:
        h = lax.conv_general_dilated(h, p["w_expand_pt"], (1, 1), "VALID",
                                     dimension_numbers=dn, precision=prec)
        h = jnp.clip(bn(h, p["bn1"]), 0.0, 6.0)
    h = lax.conv_general_dilated(h, p["w_dw_pt"], (stride, stride), ((1, 1), (1, 1)),
                                 dimension_numbers=dn, feature_group_count=hidden,
                                 precision=prec)
    h = jnp.clip(bn(h, p["bn2"]), 0.0, 6.0)
    h = lax.conv_general_dilated(h, p["w_proj_pt"], (1, 1), "VALID",
                                 dimension_numbers=dn, precision=prec)
    h = bn(h, p["bn3"])
    return x + h if use_res else h


# ---------------------------------------------------------------------------
# Demo / correctness check
# ---------------------------------------------------------------------------
if __name__ == "__main__":
    key = jax.random.PRNGKey(0)
    configs = [
        # (N, inp, oup, H, W, stride, expand_ratio)
        (2, 16, 16, 16, 16, 1, 6),   # expansion path + residual (stride=1, inp==oup)
        (2, 16, 24, 16, 16, 1, 6),   # expansion path, no residual (inp != oup)
        (2, 32, 32, 16, 16, 1, 1),   # expand_ratio == 1 path + residual
    ]
    for (N, inp, oup, H, W, stride, expand_ratio) in configs:
        key, k_x, k_w = jax.random.split(key, 3)
        x = jax.random.normal(k_x, (N, inp, H, W), dtype=jnp.float32)
        tp = make_torch_params(k_w, inp, oup, expand_ratio)
        kparams = prepare_kernel_params(tp, inp, oup, expand_ratio)

        out = inverted_residual_forward(x, kparams, inp=inp, oup=oup,
                                        stride=stride, expand_ratio=expand_ratio)
        out = jax.block_until_ready(out)

        Ho = (H + 2 - 3) // stride + 1
        Wo = (W + 2 - 3) // stride + 1
        assert out.shape == (N, oup, Ho, Wo), out.shape

        ref = ref_inverted_residual(x, tp, inp=inp, oup=oup,
                                    stride=stride, expand_ratio=expand_ratio)
        ref = jax.block_until_ready(ref)
        err = float(jnp.max(jnp.abs(out - ref)))
        tol = 1e-2 * (1.0 + float(jnp.max(jnp.abs(ref))))  # covers default MXU f32 precision
        assert err < tol, f"max abs err {err} (tol {tol}) for config " \
                          f"{(N, inp, oup, H, W, stride, expand_ratio)}"
    print("KERNEL_OK")
</pallas_src>

<mosaic_0001>
module attributes {stable_mosaic.version = 11 : i64} {
  func.func @kernel(%arg0: i32, %arg1: memref<1x256x16xf32, #tpu.memory_space<vmem>>, %arg2: memref<16x96xf32, #tpu.memory_space<vmem>>, %arg3: memref<1x96xf32, #tpu.memory_space<vmem>>, %arg4: memref<1x96xf32, #tpu.memory_space<vmem>>, %arg5: memref<9x96xf32, #tpu.memory_space<vmem>>, %arg6: memref<1x96xf32, #tpu.memory_space<vmem>>, %arg7: memref<1x96xf32, #tpu.memory_space<vmem>>, %arg8: memref<16x96xf32, #tpu.memory_space<vmem>>, %arg9: memref<16x1xf32, #tpu.memory_space<vmem>>, %arg10: memref<16x1xf32, #tpu.memory_space<vmem>>, %arg11: memref<1x16x256xf32, #tpu.memory_space<vmem>>, %arg12: memref<1x16x256xf32, #tpu.memory_space<vmem>>, %arg13: memref<18x18x96xf32, #tpu.memory_space<vmem>>) attributes {dimension_semantics = [#tpu.dimension_semantics<parallel>], iteration_bounds = array<i64: 2>, scalar_prefetch = 0 : i64, scratch_operands = 1 : i64, tpu.core_type = #tpu.core_type<tc>, window_params = [{transform_indices = @transform_0, window_bounds = array<i64: 1, 256, 16>}, {pipeline_mode = #tpu.pipeline_mode<synchronous>, transform_indices = @transform_1, window_bounds = array<i64: 16, 96>}, {pipeline_mode = #tpu.pipeline_mode<synchronous>, transform_indices = @transform_2, window_bounds = array<i64: 1, 96>}, {pipeline_mode = #tpu.pipeline_mode<synchronous>, transform_indices = @transform_3, window_bounds = array<i64: 1, 96>}, {pipeline_mode = #tpu.pipeline_mode<synchronous>, transform_indices = @transform_4, window_bounds = array<i64: 9, 96>}, {pipeline_mode = #tpu.pipeline_mode<synchronous>, transform_indices = @transform_5, window_bounds = array<i64: 1, 96>}, {pipeline_mode = #tpu.pipeline_mode<synchronous>, transform_indices = @transform_6, window_bounds = array<i64: 1, 96>}, {pipeline_mode = #tpu.pipeline_mode<synchronous>, transform_indices = @transform_7, window_bounds = array<i64: 16, 96>}, {pipeline_mode = #tpu.pipeline_mode<synchronous>, transform_indices = @transform_8, window_bounds = array<i64: 16, 1>}, {pipeline_mode = #tpu.pipeline_mode<synchronous>, transform_indices = @transform_9, window_bounds = array<i64: 16, 1>}, {transform_indices = @transform_10, window_bounds = array<i64: 1, 16, 256>}, {transform_indices = @transform_11, window_bounds = array<i64: 1, 16, 256>}]} {
    %c0 = arith.constant 0 : index
    %c0_0 = arith.constant 0 : index
    %c0_1 = arith.constant 0 : index
    %0 = vector.load %arg1[%c0, %c0_0, %c0_1] : memref<1x256x16xf32, #tpu.memory_space<vmem>>, vector<1x256x16xf32>
    %1 = vector.shape_cast %0 : vector<1x256x16xf32> to vector<256x16xf32>
    %c0_2 = arith.constant 0 : index
    %c0_3 = arith.constant 0 : index
    %2 = vector.load %arg2[%c0_2, %c0_3] : memref<16x96xf32, #tpu.memory_space<vmem>>, vector<16x96xf32>
    %cst = arith.constant dense<0.000000e+00> : vector<256x96xf32>
    %3 = tpu.matmul %1, %2, %cst {dimension_numbers = #tpu.dot_dimension_numbers<[1], [0], [0], [1], [0, 0, 1, 1], [], []>} : vector<256x16xf32>, vector<16x96xf32>, vector<256x96xf32> -> vector<256x96xf32>
    %c0_4 = arith.constant 0 : index
    %c0_5 = arith.constant 0 : index
    %4 = vector.load %arg3[%c0_4, %c0_5] : memref<1x96xf32, #tpu.memory_space<vmem>>, vector<1x96xf32>
    %5 = vector.broadcast %4 : vector<1x96xf32> to vector<256x96xf32>
    %6 = arith.mulf %3, %5 : vector<256x96xf32>
    %c0_6 = arith.constant 0 : index
    %c0_7 = arith.constant 0 : index
    %7 = vector.load %arg4[%c0_6, %c0_7] : memref<1x96xf32, #tpu.memory_space<vmem>>, vector<1x96xf32>
    %8 = vector.broadcast %7 : vector<1x96xf32> to vector<256x96xf32>
    %9 = arith.addf %6, %8 : vector<256x96xf32>
    %cst_8 = arith.constant 0.000000e+00 : f32
    %10 = vector.broadcast %cst_8 : f32 to vector<256x96xf32>
    %11 = arith.maximumf %9, %10 : vector<256x96xf32>
    %cst_9 = arith.constant 6.000000e+00 : f32
    %12 = vector.broadcast %cst_9 : f32 to vector<256x96xf32>
    %13 = arith.minimumf %11, %12 : vector<256x96xf32>
    %cst_10 = arith.constant 0.000000e+00 : f32
    %14 = vector.broadcast %cst_10 : f32 to vector<18x18x96xf32>
    %c0_11 = arith.constant 0 : index
    %c0_12 = arith.constant 0 : index
    %c0_13 = arith.constant 0 : index
    %15 = vector.load %arg13[%c0_11, %c0_12, %c0_13] : memref<18x18x96xf32, #tpu.memory_space<vmem>>, vector<18x18x96xf32>
    tpu.vector_store %arg13[%c0_11, %c0_12, %c0_13], %14 {strides = array<i32>} : memref<18x18x96xf32, #tpu.memory_space<vmem>>, vector<18x18x96xf32>,
    %16 = vector.shape_cast %13 : vector<256x96xf32> to vector<16x16x96xf32>
    %c1 = arith.constant 1 : index
    %c1_14 = arith.constant 1 : index
    %c0_15 = arith.constant 0 : index
    %17 = vector.load %arg13[%c1, %c1_14, %c0_15] : memref<18x18x96xf32, #tpu.memory_space<vmem>>, vector<16x16x96xf32>
    tpu.vector_store %arg13[%c1, %c1_14, %c0_15], %16 {strides = array<i32>} : memref<18x18x96xf32, #tpu.memory_space<vmem>>, vector<16x16x96xf32>,
    %cst_16 = arith.constant 0.000000e+00 : f32
    %18 = vector.broadcast %cst_16 : f32 to vector<16x16x96xf32>
    %c0_17 = arith.constant 0 : index
    %c0_18 = arith.constant 0 : index
    %c0_19 = arith.constant 0 : index
    %19 = vector.load %arg13[%c0_17, %c0_18, %c0_19] : memref<18x18x96xf32, #tpu.memory_space<vmem>>, vector<16x16x96xf32>
    %c0_20 = arith.constant 0 : index
    %c0_21 = arith.constant 0 : index
    %20 = vector.load %arg5[%c0_20, %c0_21] : memref<9x96xf32, #tpu.memory_space<vmem>>, vector<1x96xf32>
    %21 = vector.shape_cast %20 : vector<1x96xf32> to vector<96xf32>
    %22 = vector.shape_cast %21 : vector<96xf32> to vector<1x1x96xf32>
    %23 = vector.broadcast %22 : vector<1x1x96xf32> to vector<16x16x96xf32>
    %24 = arith.mulf %19, %23 : vector<16x16x96xf32>
    %25 = arith.addf %18, %24 : vector<16x16x96xf32>
    %c0_22 = arith.constant 0 : index
    %c1_23 = arith.constant 1 : index
    %c0_24 = arith.constant 0 : index
    %26 = vector.load %arg13[%c0_22, %c1_23, %c0_24] : memref<18x18x96xf32, #tpu.memory_space<vmem>>, vector<16x16x96xf32>
    %c1_25 = arith.constant 1 : index
    %c0_26 = arith.constant 0 : index
    %27 = vector.load %arg5[%c1_25, %c0_26] : memref<9x96xf32, #tpu.memory_space<vmem>>, vector<1x96xf32>
    %28 = vector.shape_cast %27 : vector<1x96xf32> to vector<96xf32>
    %29 = vector.shape_cast %28 : vector<96xf32> to vector<1x1x96xf32>
    %30 = vector.broadcast %29 : vector<1x1x96xf32> to vector<16x16x96xf32>
    %31 = arith.mulf %26, %30 : vector<16x16x96xf32>
    %32 = arith.addf %25, %31 : vector<16x16x96xf32>
    %c0_27 = arith.constant 0 : index
    %c2 = arith.constant 2 : index
    %c0_28 = arith.constant 0 : index
    %33 = vector.load %arg13[%c0_27, %c2, %c0_28] : memref<18x18x96xf32, #tpu.memory_space<vmem>>, vector<16x16x96xf32>
    %c2_29 = arith.constant 2 : index
    %c0_30 = arith.constant 0 : index
    %34 = vector.load %arg5[%c2_29, %c0_30] : memref<9x96xf32, #tpu.memory_space<vmem>>, vector<1x96xf32>
    %35 = vector.shape_cast %34 : vector<1x96xf32> to vector<96xf32>
    %36 = vector.shape_cast %35 : vector<96xf32> to vector<1x1x96xf32>
    %37 = vector.broadcast %36 : vector<1x1x96xf32> to vector<16x16x96xf32>
    %38 = arith.mulf %33, %37 : vector<16x16x96xf32>
    %39 = arith.addf %32, %38 : vector<16x16x96xf32>
    %c1_31 = arith.constant 1 : index
    %c0_32 = arith.constant 0 : index
    %c0_33 = arith.constant 0 : index
    %40 = vector.load %arg13[%c1_31, %c0_32, %c0_33] : memref<18x18x96xf32, #tpu.memory_space<vmem>>, vector<16x16x96xf32>
    %c3 = arith.constant 3 : index
    %c0_34 = arith.constant 0 : index
    %41 = vector.load %arg5[%c3, %c0_34] : memref<9x96xf32, #tpu.memory_space<vmem>>, vector<1x96xf32>
    %42 = vector.shape_cast %41 : vector<1x96xf32> to vector<96xf32>
    %43 = vector.shape_cast %42 : vector<96xf32> to vector<1x1x96xf32>
    %44 = vector.broadcast %43 : vector<1x1x96xf32> to vector<16x16x96xf32>
    %45 = arith.mulf %40, %44 : vector<16x16x96xf32>
    %46 = arith.addf %39, %45 : vector<16x16x96xf32>
    %c1_35 = arith.constant 1 : index
    %c1_36 = arith.constant 1 : index
    %c0_37 = arith.constant 0 : index
    %47 = vector.load %arg13[%c1_35, %c1_36, %c0_37] : memref<18x18x96xf32, #tpu.memory_space<vmem>>, vector<16x16x96xf32>
    %c4 = arith.constant 4 : index
    %c0_38 = arith.constant 0 : index
    %48 = vector.load %arg5[%c4, %c0_38] : memref<9x96xf32, #tpu.memory_space<vmem>>, vector<1x96xf32>
    %49 = vector.shape_cast %48 : vector<1x96xf32> to vector<96xf32>
    %50 = vector.shape_cast %49 : vector<96xf32> to vector<1x1x96xf32>
    %51 = vector.broadcast %50 : vector<1x1x96xf32> to vector<16x16x96xf32>
    %52 = arith.mulf %47, %51 : vector<16x16x96xf32>
    %53 = arith.addf %46, %52 : vector<16x16x96xf32>
    %c1_39 = arith.constant 1 : index
    %c2_40 = arith.constant 2 : index
    %c0_41 = arith.constant 0 : index
    %54 = vector.load %arg13[%c1_39, %c2_40, %c0_41] : memref<18x18x96xf32, #tpu.memory_space<vmem>>, vector<16x16x96xf32>
    %c5 = arith.constant 5 : index
    %c0_42 = arith.constant 0 : index
    %55 = vector.load %arg5[%c5, %c0_42] : memref<9x96xf32, #tpu.memory_space<vmem>>, vector<1x96xf32>
    %56 = vector.shape_cast %55 : vector<1x96xf32> to vector<96xf32>
    %57 = vector.shape_cast %56 : vector<96xf32> to vector<1x1x96xf32>
    %58 = vector.broadcast %57 : vector<1x1x96xf32> to vector<16x16x96xf32>
    %59 = arith.mulf %54, %58 : vector<16x16x96xf32>
    %60 = arith.addf %53, %59 : vector<16x16x96xf32>
    %c2_43 = arith.constant 2 : index
    %c0_44 = arith.constant 0 : index
    %c0_45 = arith.constant 0 : index
    %61 = vector.load %arg13[%c2_43, %c0_44, %c0_45] : memref<18x18x96xf32, #tpu.memory_space<vmem>>, vector<16x16x96xf32>
    %c6 = arith.constant 6 : index
    %c0_46 = arith.constant 0 : index
    %62 = vector.load %arg5[%c6, %c0_46] : memref<9x96xf32, #tpu.memory_space<vmem>>, vector<1x96xf32>
    %63 = vector.shape_cast %62 : vector<1x96xf32> to vector<96xf32>
    %64 = vector.shape_cast %63 : vector<96xf32> to vector<1x1x96xf32>
    %65 = vector.broadcast %64 : vector<1x1x96xf32> to vector<16x16x96xf32>
    %66 = arith.mulf %61, %65 : vector<16x16x96xf32>
    %67 = arith.addf %60, %66 : vector<16x16x96xf32>
    %c2_47 = arith.constant 2 : index
    %c1_48 = arith.constant 1 : index
    %c0_49 = arith.constant 0 : index
    %68 = vector.load %arg13[%c2_47, %c1_48, %c0_49] : memref<18x18x96xf32, #tpu.memory_space<vmem>>, vector<16x16x96xf32>
    %c7 = arith.constant 7 : index
    %c0_50 = arith.constant 0 : index
    %69 = vector.load %arg5[%c7, %c0_50] : memref<9x96xf32, #tpu.memory_space<vmem>>, vector<1x96xf32>
    %70 = vector.shape_cast %69 : vector<1x96xf32> to vector<96xf32>
    %71 = vector.shape_cast %70 : vector<96xf32> to vector<1x1x96xf32>
    %72 = vector.broadcast %71 : vector<1x1x96xf32> to vector<16x16x96xf32>
    %73 = arith.mulf %68, %72 : vector<16x16x96xf32>
    %74 = arith.addf %67, %73 : vector<16x16x96xf32>
    %c2_51 = arith.constant 2 : index
    %c2_52 = arith.constant 2 : index
    %c0_53 = arith.constant 0 : index
    %75 = vector.load %arg13[%c2_51, %c2_52, %c0_53] : memref<18x18x96xf32, #tpu.memory_space<vmem>>, vector<16x16x96xf32>
    %c8 = arith.constant 8 : index
    %c0_54 = arith.constant 0 : index
    %76 = vector.load %arg5[%c8, %c0_54] : memref<9x96xf32, #tpu.memory_space<vmem>>, vector<1x96xf32>
    %77 = vector.shape_cast %76 : vector<1x96xf32> to vector<96xf32>
    %78 = vector.shape_cast %77 : vector<96xf32> to vector<1x1x96xf32>
    %79 = vector.broadcast %78 : vector<1x1x96xf32> to vector<16x16x96xf32>
    %80 = arith.mulf %75, %79 : vector<16x16x96xf32>
    %81 = arith.addf %74, %80 : vector<16x16x96xf32>
    %c0_55 = arith.constant 0 : index
    %c0_56 = arith.constant 0 : index
    %82 = vector.load %arg6[%c0_55, %c0_56] : memref<1x96xf32, #tpu.memory_space<vmem>>, vector<1x96xf32>
    %83 = vector.shape_cast %82 : vector<1x96xf32> to vector<96xf32>
    %84 = vector.shape_cast %83 : vector<96xf32> to vector<1x1x96xf32>
    %85 = vector.broadcast %84 : vector<1x1x96xf32> to vector<16x16x96xf32>
    %86 = arith.mulf %81, %85 : vector<16x16x96xf32>
    %c0_57 = arith.constant 0 : index
    %c0_58 = arith.constant 0 : index
    %87 = vector.load %arg7[%c0_57, %c0_58] : memref<1x96xf32, #tpu.memory_space<vmem>>, vector<1x96xf32>
    %88 = vector.shape_cast %87 : vector<1x96xf32> to vector<96xf32>
    %89 = vector.shape_cast %88 : vector<96xf32> to vector<1x1x96xf32>
    %90 = vector.broadcast %89 : vector<1x1x96xf32> to vector<16x16x96xf32>
    %91 = arith.addf %86, %90 : vector<16x16x96xf32>
    %cst_59 = arith.constant 0.000000e+00 : f32
    %92 = vector.broadcast %cst_59 : f32 to vector<16x16x96xf32>
    %93 = arith.maximumf %91, %92 : vector<16x16x96xf32>
    %cst_60 = arith.constant 6.000000e+00 : f32
    %94 = vector.broadcast %cst_60 : f32 to vector<16x16x96xf32>
    %95 = arith.minimumf %93, %94 : vector<16x16x96xf32>
    %96 = vector.shape_cast %95 : vector<16x16x96xf32> to vector<256x96xf32>
    %c0_61 = arith.constant 0 : index
    %c0_62 = arith.constant 0 : index
    %97 = vector.load %arg8[%c0_61, %c0_62] : memref<16x96xf32, #tpu.memory_space<vmem>>, vector<16x96xf32>
    %cst_63 = arith.constant dense<0.000000e+00> : vector<16x256xf32>
    %98 = tpu.matmul %97, %96, %cst_63 {dimension_numbers = #tpu.dot_dimension_numbers<[1], [1], [0], [0], [0, 0, 1, 0], [], []>} : vector<16x96xf32>, vector<256x96xf32>, vector<16x256xf32> -> vector<16x256xf32>
    %c0_64 = arith.constant 0 : index
    %c0_65 = arith.constant 0 : index
    %99 = vector.load %arg9[%c0_64, %c0_65] : memref<16x1xf32, #tpu.memory_space<vmem>>, vector<16x1xf32>
    %100 = vector.broadcast %99 : vector<16x1xf32> to vector<16x256xf32>
    %101 = arith.mulf %98, %100 : vector<16x256xf32>
    %c0_66 = arith.constant 0 : index
    %c0_67 = arith.constant 0 : index
    %102 = vector.load %arg10[%c0_66, %c0_67] : memref<16x1xf32, #tpu.memory_space<vmem>>, vector<16x1xf32>
    %103 = vector.broadcast %102 : vector<16x1xf32> to vector<16x256xf32>
    %104 = arith.addf %101, %103 : vector<16x256xf32>
    %c0_68 = arith.constant 0 : index
    %c0_69 = arith.constant 0 : index
    %c0_70 = arith.constant 0 : index
    %105 = vector.load %arg11[%c0_68, %c0_69, %c0_70] : memref<1x16x256xf32, #tpu.memory_space<vmem>>, vector<1x16x256xf32>
    %106 = vector.shape_cast %105 : vector<1x16x256xf32> to vector<16x256xf32>
    %107 = arith.addf %104, %106 : vector<16x256xf32>
    %c0_71 = arith.constant 0 : index
    %c0_72 = arith.constant 0 : index
    %c0_73 = arith.constant 0 : index
    %108 = vector.load %arg12[%c0_71, %c0_72, %c0_73] : memref<1x16x256xf32, #tpu.memory_space<vmem>>, vector<1x16x256xf32>
    %109 = vector.shape_cast %108 : vector<1x16x256xf32> to vector<16x256xf32>
    %110 = vector.shape_cast %107 : vector<16x256xf32> to vector<1x16x256xf32>
    tpu.vector_store %arg12[%c0_71, %c0_72, %c0_73], %110 {strides = array<i32>} : memref<1x16x256xf32, #tpu.memory_space<vmem>>, vector<1x16x256xf32>,
    return
  }
  func.func @transform_0(%arg0: i32) -> (i32, i32, i32) {
    %c0_i32 = arith.constant 0 : i32
    %c0_i32_0 = arith.constant 0 : i32
    %c0_i32_1 = arith.constant 0 : i32
    return %arg0, %c0_i32, %c0_i32_0 : i32, i32, i32
  }
  func.func @transform_1(%arg0: i32) -> (i32, i32) {
    %c0_i32 = arith.constant 0 : i32
    %c0_i32_0 = arith.constant 0 : i32
    %c0_i32_1 = arith.constant 0 : i32
    return %c0_i32, %c0_i32_0 : i32, i32
  }
  func.func @transform_2(%arg0: i32) -> (i32, i32) {
    %c0_i32 = arith.constant 0 : i32
    %c0_i32_0 = arith.constant 0 : i32
    %c0_i32_1 = arith.constant 0 : i32
    return %c0_i32, %c0_i32_0 : i32, i32
  }
  func.func @transform_3(%arg0: i32) -> (i32, i32) {
    %c0_i32 = arith.constant 0 : i32
    %c0_i32_0 = arith.constant 0 : i32
    %c0_i32_1 = arith.constant 0 : i32
    return %c0_i32, %c0_i32_0 : i32, i32
  }
  func.func @transform_4(%arg0: i32) -> (i32, i32) {
    %c0_i32 = arith.constant 0 : i32
    %c0_i32_0 = arith.constant 0 : i32
    %c0_i32_1 = arith.constant 0 : i32
    return %c0_i32, %c0_i32_0 : i32, i32
  }
  func.func @transform_5(%arg0: i32) -> (i32, i32) {
    %c0_i32 = arith.constant 0 : i32
    %c0_i32_0 = arith.constant 0 : i32
    %c0_i32_1 = arith.constant 0 : i32
    return %c0_i32, %c0_i32_0 : i32, i32
  }
  func.func @transform_6(%arg0: i32) -> (i32, i32) {
    %c0_i32 = arith.constant 0 : i32
    %c0_i32_0 = arith.constant 0 : i32
    %c0_i32_1 = arith.constant 0 : i32
    return %c0_i32, %c0_i32_0 : i32, i32
  }
  func.func @transform_7(%arg0: i32) -> (i32, i32) {
    %c0_i32 = arith.constant 0 : i32
    %c0_i32_0 = arith.constant 0 : i32
    %c0_i32_1 = arith.constant 0 : i32
    return %c0_i32, %c0_i32_0 : i32, i32
  }
  func.func @transform_8(%arg0: i32) -> (i32, i32) {
    %c0_i32 = arith.constant 0 : i32
    %c0_i32_0 = arith.constant 0 : i32
    %c0_i32_1 = arith.constant 0 : i32
    return %c0_i32, %c0_i32_0 : i32, i32
  }
  func.func @transform_9(%arg0: i32) -> (i32, i32) {
    %c0_i32 = arith.constant 0 : i32
    %c0_i32_0 = arith.constant 0 : i32
    %c0_i32_1 = arith.constant 0 : i32
    return %c0_i32, %c0_i32_0 : i32, i32
  }
  func.func @transform_10(%arg0: i32) -> (i32, i32, i32) {
    %c0_i32 = arith.constant 0 : i32
    %c0_i32_0 = arith.constant 0 : i32
    %c0_i32_1 = arith.constant 0 : i32
    return %arg0, %c0_i32, %c0_i32_0 : i32, i32, i32
  }
  func.func @transform_11(%arg0: i32) -> (i32, i32, i32) {
    %c0_i32 = arith.constant 0 : i32
    %c0_i32_0 = arith.constant 0 : i32
    %c0_i32_1 = arith.constant 0 : i32
    return %arg0, %c0_i32, %c0_i32_0 : i32, i32, i32
  }
}

</mosaic_0001>

<llo_original>
// kernel: inverted_residual_forward.1
$region0: #{inverted_residual_forward.1}
  #allocation0 [shape = 'u32[]', space=smem, size = 0x4, offset = 0x4, fixed_abs, tag = 'smem constant byte address 0x4 - core index']
  #allocation1 [shape = 'u32[144,128]{1,0:T(1,128)}', space=vmem, size = 0x12000, scoped, tag = 'internal scratch']
  #allocation2 [shape = 'f32[18,18,96]{2,1,0:T(8,128)}', space=vmem, size = 0x36000, scoped, tag = 'scratch operand']
  %s0 = inlined_call_operand.vmem [shape: f32[2,256,16], index: 0, kind: input, shape index: {}]
  %s1 = inlined_call_operand.vmem [shape: f32[16,96], index: 1, kind: input, shape index: {}]
  %s2 = inlined_call_operand.vmem [shape: f32[1,96], index: 2, kind: input, shape index: {}]
  %s3 = inlined_call_operand.vmem [shape: f32[1,96], index: 3, kind: input, shape index: {}]
  %s4 = inlined_call_operand.vmem [shape: f32[9,96], index: 4, kind: input, shape index: {}]
  %s5 = inlined_call_operand.vmem [shape: f32[1,96], index: 5, kind: input, shape index: {}]
  %s6 = inlined_call_operand.vmem [shape: f32[1,96], index: 6, kind: input, shape index: {}]
  %s7 = inlined_call_operand.vmem [shape: f32[16,96], index: 7, kind: input, shape index: {}]
  %s8 = inlined_call_operand.vmem [shape: f32[16,1], index: 8, kind: input, shape index: {}]
  %s9 = inlined_call_operand.vmem [shape: f32[16,1], index: 9, kind: input, shape index: {}]
  %s10 = inlined_call_operand.vmem [shape: f32[2,16,256], index: 10, kind: input, shape index: {}]
  %s11 = inlined_call_operand.vmem [shape: f32[2,16,256], index: 11, kind: output, shape index: {}]
  %s12 = sld [smem:[#allocation0]]
  $region77: #{inverted_residual_forward.1} parent=0
    _
  %s14 = ssub.s32 1, %s12
  %s15 = scalar_select 0, %s14, %s12
  loop: start=0, step=1, limit=4
  $region2: #{inverted_residual_forward.1} parent=0 // loop_pre_header
    _
  $region3: #{inverted_residual_forward.1} parent=0 // loop_header
    %s17 = sphi 0, %s21
    %p18 = scmp.ge.s32.totalorder %s17, 4
    %s27 = sphi 0, %s29
    %s30 = sphi 0, %s27
    %s31 = sphi 0, %s30
    %s47 = sphi 0, %s31
    %s51 = sphi 0, %s51
    %s53 = sphi 0, %s51
    %s54 = sphi 0, %s53
    %s68 = sphi 0, %s54
    %s72 = sphi 0, %s72
    %s74 = sphi 0, %s72
    %s75 = sphi 0, %s74
    %s89 = sphi 0, %s75
    %s93 = sphi 0, %s93
    %s95 = sphi 0, %s93
    %s96 = sphi 0, %s95
    %s110 = sphi 0, %s96
    %s114 = sphi 0, %s114
    %s116 = sphi 0, %s114
    %s117 = sphi 0, %s116
    %s131 = sphi 0, %s117
    %s135 = sphi 0, %s135
    %s137 = sphi 0, %s135
    %s138 = sphi 0, %s137
    %s152 = sphi 0, %s138
    %s156 = sphi 0, %s156
    %s158 = sphi 0, %s156
    %s159 = sphi 0, %s158
    %s173 = sphi 0, %s159
    %s177 = sphi 0, %s177
    %s179 = sphi 0, %s177
    %s180 = sphi 0, %s179
    %s194 = sphi 0, %s180
    %s198 = sphi 0, %s198
    %s200 = sphi 0, %s198
    %s201 = sphi 0, %s200
    %s215 = sphi 0, %s201
    %s219 = sphi 0, %s219
    %s221 = sphi 0, %s219
    %s222 = sphi 0, %s221
    %s236 = sphi 0, %s222
    %s242 = sphi 0, %s244
    %s245 = sphi 0, %s242
    %s246 = sphi 0, %s245
    %s262 = sphi 0, %s246
    %s268 = sphi 0, %s270
    %s271 = sphi 0, %s268
    %s272 = sphi 0, %s271
    %s288 = sphi 0, %s272
  $region4: #{inverted_residual_forward.1} parent=0 // loop_header_branch
    %20 = sbr.rel (%p18) target = $region8
  $region5: #{inverted_residual_forward.1} parent=0 // loop_body
    %s22 = ssub.s32 %s17, 1
    %s23 = ssub.s32 %s17, 2
    %s24 = sadd.s32 %s17, 1
    %s25 = ssub.s32 %s17, %s24
    %p26 = scmp.eq.s32.totalorder %s25, 0
    %s28 = sadd.s32 %s27, 1
    %s29 = scalar_select %p26, %s27, %s28
    %p32 = pneg %p26
    %p33 = scmp.eq.s32.totalorder %s17, 1
    %p34 = por %p32, %p33
    %p35 = scmp.ne.s32.totalorder %s27, %s30
    %p36 = scmp.eq.s32.totalorder %s17, 0
    %p37 = por %p35, %p36
    %p38 = scmp.ne.s32.totalorder %s27, %s30
    %p39 = scmp.eq.s32.totalorder %s22, 1
    %p40 = por %p38, %p39
    %p41 = scmp.ne.s32.totalorder %s30, %s31
    %p42 = scmp.eq.s32.totalorder %s22, 0
    %p43 = por %p41, %p42
    %p44 = scmp.ne.s32.totalorder %s30, %s31
    %p45 = scmp.eq.s32.totalorder %s23, 1
    %p46 = por %p44, %p45
    %p48 = scmp.ne.s32.totalorder %s31, %s47
    %p49 = scmp.eq.s32.totalorder %s23, 0
    %p50 = por %p48, %p49
    %s52 = sadd.s32 %s51, 1
    %p55 = scmp.eq.s32.totalorder %s17, 1
    %p56 = scmp.ne.s32.totalorder %s51, %s53
    %p57 = scmp.eq.s32.totalorder %s17, 0
    %p58 = por %p56, %p57
    %p59 = scmp.ne.s32.totalorder %s51, %s53
    %p60 = scmp.eq.s32.totalorder %s22, 1
    %p61 = por %p59, %p60
    %p62 = scmp.ne.s32.totalorder %s53, %s54
    %p63 = scmp.eq.s32.totalorder %s22, 0
    %p64 = por %p62, %p63
    %p65 = scmp.ne.s32.totalorder %s53, %s54
    %p66 = scmp.eq.s32.totalorder %s23, 1
    %p67 = por %p65, %p66
    %p69 = scmp.ne.s32.totalorder %s54, %s68
    %p70 = scmp.eq.s32.totalorder %s23, 0
    %p71 = por %p69, %p70
    %s73 = sadd.s32 %s72, 1
    %p76 = scmp.eq.s32.totalorder %s17, 1
    %p77 = scmp.ne.s32.totalorder %s72, %s74
    %p78 = scmp.eq.s32.totalorder %s17, 0
    %p79 = por %p77, %p78
    %p80 = scmp.ne.s32.totalorder %s72, %s74
    %p81 = scmp.eq.s32.totalorder %s22, 1
    %p82 = por %p80, %p81
    %p83 = scmp.ne.s32.totalorder %s74, %s75
    %p84 = scmp.eq.s32.totalorder %s22, 0
    %p85 = por %p83, %p84
    %p86 = scmp.ne.s32.totalorder %s74, %s75
    %p87 = scmp.eq.s32.totalorder %s23, 1
    %p88 = por %p86, %p87
    %p90 = scmp.ne.s32.totalorder %s75, %s89
    %p91 = scmp.eq.s32.totalorder %s23, 0
    %p92 = por %p90, %p91
    %s94 = sadd.s32 %s93, 1
    %p97 = scmp.eq.s32.totalorder %s17, 1
    %p98 = scmp.ne.s32.totalorder %s93, %s95
    %p99 = scmp.eq.s32.totalorder %s17, 0
    %p100 = por %p98, %p99
    %p101 = scmp.ne.s32.totalorder %s93, %s95
    %p102 = scmp.eq.s32.totalorder %s22, 1
    %p103 = por %p101, %p102
    %p104 = scmp.ne.s32.totalorder %s95, %s96
    %p105 = scmp.eq.s32.totalorder %s22, 0
    %p106 = por %p104, %p105
    %p107 = scmp.ne.s32.totalorder %s95, %s96
    %p108 = scmp.eq.s32.totalorder %s23, 1
    %p109 = por %p107, %p108
    %p111 = scmp.ne.s32.totalorder %s96, %s110
    %p112 = scmp.eq.s32.totalorder %s23, 0
    %p113 = por %p111, %p112
    %s115 = sadd.s32 %s114, 1
    %p118 = scmp.eq.s32.totalorder %s17, 1
    %p119 = scmp.ne.s32.totalorder %s114, %s116
    %p120 = scmp.eq.s32.totalorder %s17, 0
    %p121 = por %p119, %p120
    %p122 = scmp.ne.s32.totalorder %s114, %s116
    %p123 = scmp.eq.s32.totalorder %s22, 1
    %p124 = por %p122, %p123
    %p125 = scmp.ne.s32.totalorder %s116, %s117
    %p126 = scmp.eq.s32.totalorder %s22, 0
    %p127 = por %p125, %p126
    %p128 = scmp.ne.s32.totalorder %s116, %s117
    %p129 = scmp.eq.s32.totalorder %s23, 1
    %p130 = por %p128, %p129
    %p132 = scmp.ne.s32.totalorder %s117, %s131
    %p133 = scmp.eq.s32.totalorder %s23, 0
    %p134 = por %p132, %p133
    %s136 = sadd.s32 %s135, 1
    %p139 = scmp.eq.s32.totalorder %s17, 1
    %p140 = scmp.ne.s32.totalorder %s135, %s137
    %p141 = scmp.eq.s32.totalorder %s17, 0
    %p142 = por %p140, %p141
    %p143 = scmp.ne.s32.totalorder %s135, %s137
    %p144 = scmp.eq.s32.totalorder %s22, 1
    %p145 = por %p143, %p144
    %p146 = scmp.ne.s32.totalorder %s137, %s138
    %p147 = scmp.eq.s32.totalorder %s22, 0
    %p148 = por %p146, %p147
    %p149 = scmp.ne.s32.totalorder %s137, %s138
    %p150 = scmp.eq.s32.totalorder %s23, 1
    %p151 = por %p149, %p150
    %p153 = scmp.ne.s32.totalorder %s138, %s152
    %p154 = scmp.eq.s32.totalorder %s23, 0
    %p155 = por %p153, %p154
    %s157 = sadd.s32 %s156, 1
    %p160 = scmp.eq.s32.totalorder %s17, 1
    %p161 = scmp.ne.s32.totalorder %s156, %s158
    %p162 = scmp.eq.s32.totalorder %s17, 0
    %p163 = por %p161, %p162
    %p164 = scmp.ne.s32.totalorder %s156, %s158
    %p165 = scmp.eq.s32.totalorder %s22, 1
    %p166 = por %p164, %p165
    %p167 = scmp.ne.s32.totalorder %s158, %s159
    %p168 = scmp.eq.s32.totalorder %s22, 0
    %p169 = por %p167, %p168
    %p170 = scmp.ne.s32.totalorder %s158, %s159
    %p171 = scmp.eq.s32.totalorder %s23, 1
    %p172 = por %p170, %p171
    %p174 = scmp.ne.s32.totalorder %s159, %s173
    %p175 = scmp.eq.s32.totalorder %s23, 0
    %p176 = por %p174, %p175
    %s178 = sadd.s32 %s177, 1
    %p181 = scmp.eq.s32.totalorder %s17, 1
    %p182 = scmp.ne.s32.totalorder %s177, %s179
    %p183 = scmp.eq.s32.totalorder %s17, 0
    %p184 = por %p182, %p183
    %p185 = scmp.ne.s32.totalorder %s177, %s179
    %p186 = scmp.eq.s32.totalorder %s22, 1
    %p187 = por %p185, %p186
    %p188 = scmp.ne.s32.totalorder %s179, %s180
    %p189 = scmp.eq.s32.totalorder %s22, 0
    %p190 = por %p188, %p189
    %p191 = scmp.ne.s32.totalorder %s179, %s180
    %p192 = scmp.eq.s32.totalorder %s23, 1
    %p193 = por %p191, %p192
    %p195 = scmp.ne.s32.totalorder %s180, %s194
    %p196 = scmp.eq.s32.totalorder %s23, 0
    %p197 = por %p195, %p196
    %s199 = sadd.s32 %s198, 1
    %p202 = scmp.eq.s32.totalorder %s17, 1
    %p203 = scmp.ne.s32.totalorder %s198, %s200
    %p204 = scmp.eq.s32.totalorder %s17, 0
    %p205 = por %p203, %p204
    %p206 = scmp.ne.s32.totalorder %s198, %s200
    %p207 = scmp.eq.s32.totalorder %s22, 1
    %p208 = por %p206, %p207
    %p209 = scmp.ne.s32.totalorder %s200, %s201
    %p210 = scmp.eq.s32.totalorder %s22, 0
    %p211 = por %p209, %p210
    %p212 = scmp.ne.s32.totalorder %s200, %s201
    %p213 = scmp.eq.s32.totalorder %s23, 1
    %p214 = por %p212, %p213
    %p216 = scmp.ne.s32.totalorder %s201, %s215
    %p217 = scmp.eq.s32.totalorder %s23, 0
    %p218 = por %p216, %p217
    %s220 = sadd.s32 %s219, 1
    %p223 = scmp.eq.s32.totalorder %s17, 1
    %p224 = scmp.ne.s32.totalorder %s219, %s221
    %p225 = scmp.eq.s32.totalorder %s17, 0
    %p226 = por %p224, %p225
    %p227 = scmp.ne.s32.totalorder %s219, %s221
    %p228 = scmp.eq.s32.totalorder %s22, 1
    %p229 = por %p227, %p228
    %p230 = scmp.ne.s32.totalorder %s221, %s222
    %p231 = scmp.eq.s32.totalorder %s22, 0
    %p232 = por %p230, %p231
    %p233 = scmp.ne.s32.totalorder %s221, %s222
    %p234 = scmp.eq.s32.totalorder %s23, 1
    %p235 = por %p233, %p234
    %p237 = scmp.ne.s32.totalorder %s222, %s236
    %p238 = scmp.eq.s32.totalorder %s23, 0
    %p239 = por %p237, %p238
    %s240 = ssub.s32 %s17, %s24
    %p241 = scmp.eq.s32.totalorder %s240, 0
    %s243 = sadd.s32 %s242, 1
    %s244 = scalar_select %p241, %s242, %s243
    %p247 = pneg %p241
    %p248 = scmp.eq.s32.totalorder %s17, 1
    %p249 = por %p247, %p248
    %p250 = scmp.ne.s32.totalorder %s242, %s245
    %p251 = scmp.eq.s32.totalorder %s17, 0
    %p252 = por %p250, %p251
    %p253 = scmp.ne.s32.totalorder %s242, %s245
    %p254 = scmp.eq.s32.totalorder %s22, 1
    %p255 = por %p253, %p254
    %p256 = scmp.ne.s32.totalorder %s245, %s246
    %p257 = scmp.eq.s32.totalorder %s22, 0
    %p258 = por %p256, %p257
    %p259 = scmp.ne.s32.totalorder %s245, %s246
    %p260 = scmp.eq.s32.totalorder %s23, 1
    %p261 = por %p259, %p260
    %p263 = scmp.ne.s32.totalorder %s246, %s262
    %p264 = scmp.eq.s32.totalorder %s23, 0
    %p265 = por %p263, %p264
    %s266 = ssub.s32 %s17, %s24
    %p267 = scmp.eq.s32.totalorder %s266, 0
    %s269 = sadd.s32 %s268, 1
    %s270 = scalar_select %p267, %s268, %s269
    %p273 = pneg %p267
    %p274 = scmp.eq.s32.totalorder %s17, 1
    %p275 = por %p273, %p274
    %p276 = scmp.ne.s32.totalorder %s268, %s271
    %p277 = scmp.eq.s32.totalorder %s17, 0
    %p278 = por %p276, %p277
    %p279 = scmp.ne.s32.totalorder %s268, %s271
    %p280 = scmp.eq.s32.totalorder %s22, 1
    %p281 = por %p279, %p280
    %p282 = scmp.ne.s32.totalorder %s271, %s272
    %p283 = scmp.eq.s32.totalorder %s22, 0
    %p284 = por %p282, %p283
    %p285 = scmp.ne.s32.totalorder %s271, %s272
    %p286 = scmp.eq.s32.totalorder %s23, 1
    %p287 = por %p285, %p286
    %p289 = scmp.ne.s32.totalorder %s272, %s288
    %p290 = scmp.eq.s32.totalorder %s23, 0
    %p291 = por %p289, %p290
    %p292 = scmp.le.s32.totalorder 1, %s17
    %p293 = scmp.lt.s32.totalorder %s17, 3
    %p294 = pnand %p292, %p293
    %p295 = pneg %p294
    // Predicated region
    $region9: #{inverted_residual_forward.1} parent=5 // pred_check
      _
    $region10: #{inverted_residual_forward.1} parent=5 // pred_check_branch
      %297 = sbr.rel (%p294) target = $region12
    $region11: #{inverted_residual_forward.1} parent=5 // pred_region
      %s298 = ssub.s32 %s17, 1
      // Predicated region
      $region13: #{inverted_residual_forward.1} parent=11 // pred_check
        %p299 = pneg %p64
      $region14: #{inverted_residual_forward.1} parent=11 // pred_check_branch
        %301 = sbr.rel (%p299) target = $region16
      $region15: #{inverted_residual_forward.1} parent=11 // pred_region
        _
      $region16: #{inverted_residual_forward.1} parent=11 // pred_fallthru
        _
      // Predicated region
      $region17: #{inverted_residual_forward.1} parent=11 // pred_check
        %p302 = pneg %p85
      $region18: #{inverted_residual_forward.1} parent=11 // pred_check_branch
        %304 = sbr.rel (%p302) target = $region20
      $region19: #{inverted_residual_forward.1} parent=11 // pred_region
        _
      $region20: #{inverted_residual_forward.1} parent=11 // pred_fallthru
        _
      // Predicated region
      $region21: #{inverted_residual_forward.1} parent=11 // pred_check
        %p305 = pneg %p106
      $region22: #{inverted_residual_forward.1} parent=11 // pred_check_branch
        %307 = sbr.rel (%p305) target = $region24
      $region23: #{inverted_residual_forward.1} parent=11 // pred_region
        _
      $region24: #{inverted_residual_forward.1} parent=11 // pred_fallthru
        _
      // Predicated region
      $region25: #{inverted_residual_forward.1} parent=11 // pred_check
        %p308 = pneg %p127
      $region26: #{inverted_residual_forward.1} parent=11 // pred_check_branch
        %310 = sbr.rel (%p308) target = $region28
      $region27: #{inverted_residual_forward.1} parent=11 // pred_region
        _
      $region28: #{inverted_residual_forward.1} parent=11 // pred_fallthru
        _
      // Predicated region
      $region29: #{inverted_residual_forward.1} parent=11 // pred_check
        %p311 = pneg %p148
      $region30: #{inverted_residual_forward.1} parent=11 // pred_check_branch
        %313 = sbr.rel (%p311) target = $region32
      $region31: #{inverted_residual_forward.1} parent=11 // pred_region
        _
      $region32: #{inverted_residual_forward.1} parent=11 // pred_fallthru
        _
      // Predicated region
      $region33: #{inverted_residual_forward.1} parent=11 // pred_check
        %p314 = pneg %p169
      $region34: #{inverted_residual_forward.1} parent=11 // pred_check_branch
        %316 = sbr.rel (%p314) target = $region36
      $region35: #{inverted_residual_forward.1} parent=11 // pred_region
        _
      $region36: #{inverted_residual_forward.1} parent=11 // pred_fallthru
        _
      // Predicated region
      $region37: #{inverted_residual_forward.1} parent=11 // pred_check
        %p317 = pneg %p190
      $region38: #{inverted_residual_forward.1} parent=11 // pred_check_branch
        %319 = sbr.rel (%p317) target = $region40
      $region39: #{inverted_residual_forward.1} parent=11 // pred_region
        _
      $region40: #{inverted_residual_forward.1} parent=11 // pred_fallthru
        _
      // Predicated region
      $region41: #{inverted_residual_forward.1} parent=11 // pred_check
        %p320 = pneg %p211
      $region42: #{inverted_residual_forward.1} parent=11 // pred_check_branch
        %322 = sbr.rel (%p320) target = $region44
      $region43: #{inverted_residual_forward.1} parent=11 // pred_region
        _
      $region44: #{inverted_residual_forward.1} parent=11 // pred_fallthru
        _
      // Predicated region
      $region45: #{inverted_residual_forward.1} parent=11 // pred_check
        %p323 = pneg %p232
      $region46: #{inverted_residual_forward.1} parent=11 // pred_check_branch
        %325 = sbr.rel (%p323) target = $region48
      $region47: #{inverted_residual_forward.1} parent=11 // pred_region
        _
      $region48: #{inverted_residual_forward.1} parent=11 // pred_fallthru
        _
    $region12: #{inverted_residual_forward.1} parent=5 // pred_fallthru
      _
    %p326 = scmp.lt.s32.totalorder %s17, 2
    // Predicated region
    $region49: #{inverted_residual_forward.1} parent=5 // pred_check
      %p327 = pneg %p326
    $region50: #{inverted_residual_forward.1} parent=5 // pred_check_branch
      %329 = sbr.rel (%p327) target = $region52
    $region51: #{inverted_residual_forward.1} parent=5 // pred_region
      // Predicated region
      $region53: #{inverted_residual_forward.1} parent=51 // pred_check
        %p330 = pneg %p37
      $region54: #{inverted_residual_forward.1} parent=51 // pred_check_branch
        %332 = sbr.rel (%p330) target = $region56
      $region55: #{inverted_residual_forward.1} parent=51 // pred_region
        %p333 = scmp.lt.s32.totalorder %s17, 1
        %s334 = scalar_select %p333, %s17, 1
        %s335 = smul.addr %s334, 32
        %s336 = smul.addr %s335, 8
        %s337 = scalar_lea.vmem %s0, %s336
      $region56: #{inverted_residual_forward.1} parent=51 // pred_fallthru
        _
      // Predicated region
      $region57: #{inverted_residual_forward.1} parent=51 // pred_check
        %p338 = pneg %p252
      $region58: #{inverted_residual_forward.1} parent=51 // pred_check_branch
        %340 = sbr.rel (%p338) target = $region60
      $region59: #{inverted_residual_forward.1} parent=51 // pred_region
        %p341 = scmp.lt.s32.totalorder %s17, 1
        %s342 = scalar_select %p341, %s17, 1
        %s343 = smul.addr %s342, 4
        %s344 = smul.addr %s343, 8
        %s345 = scalar_lea.vmem %s10, %s344
      $region60: #{inverted_residual_forward.1} parent=51 // pred_fallthru
        _
    $region52: #{inverted_residual_forward.1} parent=5 // pred_fallthru
      _
    %p346 = scmp.le.s32.totalorder 1, %s17
    %p347 = scmp.lt.s32.totalorder %s17, 3
    %p348 = pnand %p346, %p347
    %p349 = pneg %p348
    // Predicated region
    $region61: #{inverted_residual_forward.1} parent=5 // pred_check
      _
    $region62: #{inverted_residual_forward.1} parent=5 // pred_check_branch
      %351 = sbr.rel (%p348) target = $region64
    $region63: #{inverted_residual_forward.1} parent=5 // pred_region
      %s352 = ssub.s32 %s17, 1
      %p353 = scmp.lt.s32.totalorder %s22, 1
      %s354 = scalar_select %p353, %s22, 1
      %s355 = smul.addr %s354, 32
      %s356 = smul.addr %s355, 8
      %s357 = scalar_lea.vmem %s0, %s356
      %p358 = pneg %p43
      %p359 = pneg %p40
      %p360 = pneg %p64
      %p361 = pneg %p61
      %p362 = pneg %p85
      %p363 = pneg %p82
      %p364 = pneg %p106
      %p365 = pneg %p103
      %p366 = pneg %p127
      %p367 = pneg %p124
      %p368 = pneg %p148
      %p369 = pneg %p145
      %p370 = pneg %p169
      %p371 = pneg %p166
      %p372 = pneg %p190
      %p373 = pneg %p187
      %p374 = pneg %p211
      %p375 = pneg %p208
      %p376 = pneg %p232
      %p377 = pneg %p229
      %p378 = scmp.lt.s32.totalorder %s22, 1
      %s379 = scalar_select %p378, %s22, 1
      %s380 = smul.addr %s379, 4
      %s381 = smul.addr %s380, 8
      %s382 = scalar_lea.vmem %s10, %s381
      %p383 = pneg %p258
      %p384 = pneg %p255
      %p385 = pneg %p284
      %p386 = pneg %p281
      %p387 = scmp.lt.s32.totalorder %s22, 1
      %s388 = scalar_select %p387, %s22, 1
      %s389 = smul.addr %s388, 4
      %s390 = smul.addr %s389, 8
      %s391 = scalar_lea.vmem %s11, %s390
      %p392 = scmp.lt.s32.totalorder %s22, 1
      %s393 = scalar_select %p392, %s22, 1
      %s394 = smul.addr %s393, 32
      %s395 = smul.addr %s394, 8
      %s396 = scalar_lea.vmem %s0, %s395
      %p397 = scmp.lt.s32.totalorder %s22, 1
      %s398 = scalar_select %p397, %s22, 1
      %s399 = smul.addr %s398, 4
      %s400 = smul.addr %s399, 8
      %s401 = scalar_lea.vmem %s10, %s400
      %p402 = scmp.lt.s32.totalorder %s22, 1
      %s403 = scalar_select %p402, %s22, 1
      %s404 = smul.addr %s403, 4
      %s405 = smul.addr %s404, 8
      %s406 = scalar_lea.vmem %s11, %s405
      %v407 = vld [vmem:[%s396] sm:$0xff]
      %v408 = vld [vmem:[%s396 + $0x8] sm:$0xff]
      %v409 = vld [vmem:[%s396 + $0x10] sm:$0xff]
      %v410 = vld [vmem:[%s396 + $0x18] sm:$0xff]
      %v411 = vld [vmem:[%s396 + $0x20] sm:$0xff]
      %v412 = vld [vmem:[%s396 + $0x28] sm:$0xff]
      %v413 = vld [vmem:[%s396 + $0x30] sm:$0xff]
      %v414 = vld [vmem:[%s396 + $0x38] sm:$0xff]
      %v415 = vld [vmem:[%s396 + $0x40] sm:$0xff]
      %v416 = vld [vmem:[%s396 + $0x48] sm:$0xff]
      %v417 = vld [vmem:[%s396 + $0x50] sm:$0xff]
      %v418 = vld [vmem:[%s396 + $0x58] sm:$0xff]
      %v419 = vld [vmem:[%s396 + $0x60] sm:$0xff]
      %v420 = vld [vmem:[%s396 + $0x68] sm:$0xff]
      %v421 = vld [vmem:[%s396 + $0x70] sm:$0xff]
      %v422 = vld [vmem:[%s396 + $0x78] sm:$0xff]
      %v423 = vld [vmem:[%s396 + $0x80] sm:$0xff]
      %v424 = vld [vmem:[%s396 + $0x88] sm:$0xff]
      %v425 = vld [vmem:[%s396 + $0x90] sm:$0xff]
      %v426 = vld [vmem:[%s396 + $0x98] sm:$0xff]
      %v427 = vld [vmem:[%s396 + $0xa0] sm:$0xff]
      %v428 = vld [vmem:[%s396 + $0xa8] sm:$0xff]
      %v429 = vld [vmem:[%s396 + $0xb0] sm:$0xff]
      %v430 = vld [vmem:[%s396 + $0xb8] sm:$0xff]
      %v431 = vld [vmem:[%s396 + $0xc0] sm:$0xff]
      %v432 = vld [vmem:[%s396 + $0xc8] sm:$0xff]
      %v433 = vld [vmem:[%s396 + $0xd0] sm:$0xff]
      %v434 = vld [vmem:[%s396 + $0xd8] sm:$0xff]
      %v435 = vld [vmem:[%s396 + $0xe0] sm:$0xff]
      %v436 = vld [vmem:[%s396 + $0xe8] sm:$0xff]
      %v437 = vld [vmem:[%s396 + $0xf0] sm:$0xff]
      %v438 = vld [vmem:[%s396 + $0xf8] sm:$0xff]
      %v439 = vld [vmem:[%s1] sm:$0xff]
      %v440 = vld [vmem:[%s1 + $0x8] sm:$0xff]
      %vm441 = vcmask 130048
      %v443 = vsel %vm441, %v407, 0
      %v446 = vsel %vm441, %v408, 0
      %v449 = vsel %vm441, %v409, 0
      %v452 = vsel %vm441, %v410, 0
      %v455 = vsel %vm441, %v411, 0
      %v458 = vsel %vm441, %v412, 0
      %v461 = vsel %vm441, %v413, 0
      %v464 = vsel %vm441, %v414, 0
      %v467 = vsel %vm441, %v415, 0
      %v470 = vsel %vm441, %v416, 0
      %v473 = vsel %vm441, %v417, 0
      %v476 = vsel %vm441, %v418, 0
      %v479 = vsel %vm441, %v419, 0
      %v482 = vsel %vm441, %v420, 0
      %v485 = vsel %vm441, %v421, 0
      %v488 = vsel %vm441, %v422, 0
      %v491 = vsel %vm441, %v423, 0
      %v494 = vsel %vm441, %v424, 0
      %v497 = vsel %vm441, %v425, 0
      %v500 = vsel %vm441, %v426, 0
      %v503 = vsel %vm441, %v427, 0
      %v506 = vsel %vm441, %v428, 0
      %v509 = vsel %vm441, %v429, 0
      %v512 = vsel %vm441, %v430, 0
      %v515 = vsel %vm441, %v431, 0
      %v518 = vsel %vm441, %v432, 0
      %v521 = vsel %vm441, %v433, 0
      %v524 = vsel %vm441, %v434, 0
      %v527 = vsel %vm441, %v435, 0
      %v530 = vsel %vm441, %v436, 0
      %v533 = vsel %vm441, %v437, 0
      %v536 = vsel %vm441, %v438, 0
      %538 = vmatprep.subr.mxu0 0.0
      %539 = vmatpush1.msra.mxu0 %v439
      %540 = vmatprep.subr.mxu0 0.0
      %541 = vmatpush1.msra.mxu0 %v440
      %542 = vmatprep.subr.mxu0 0.0
      %543 = vmatpush1.msra.mxu0 0.0
      %544 = vmatprep.subr.mxu0 0.0
      %545 = vmatpush1.msra.mxu0 0.0
      %546 = vmatprep.subr.mxu0 0.0
      %547 = vmatpush1.msra.mxu0 0.0
      %548 = vmatprep.subr.mxu0 0.0
      %549 = vmatpush1.msra.mxu0 0.0
      %550 = vmatprep.subr.mxu0 0.0
      %551 = vmatpush1.msra.mxu0 0.0
      %552 = vmatprep.subr.mxu0 0.0
      %553 = vmatpush1.msra.mxu0 0.0
      %554 = vmatprep.subr.mxu0 0.0
      %555 = vmatpush1.msra.mxu0 0.0
      %556 = vmatprep.subr.mxu0 0.0
      %557 = vmatpush1.msra.mxu0 0.0
      %558 = vmatprep.subr.mxu0 0.0
      %559 = vmatpush1.msra.mxu0 0.0
      %560 = vmatprep.subr.mxu0 0.0
      %561 = vmatpush1.msra.mxu0 0.0
      %562 = vmatprep.subr.mxu0 0.0
      %563 = vmatpush1.msra.mxu0 0.0
      %564 = vmatprep.subr.mxu0 0.0
      %565 = vmatpush1.msra.mxu0 0.0
      %566 = vmatprep.subr.mxu0 0.0
      %567 = vmatpush1.msra.mxu0 0.0
      %568 = vmatprep.subr.mxu0 0.0
      %569 = vmatpush1.msra.mxu0 0.0
      %570 = vmatprep.subr.mxu0 0.0
      %571 = vmatpush1.msra.mxu0 0.0
      %572 = vmatprep.subr.mxu0 0.0
      %573 = vmatpush1.msra.mxu0 0.0
      %574 = vmatprep.subr.mxu0 0.0
      %575 = vmatpush1.msra.mxu0 0.0
      %576 = vmatprep.subr.mxu0 0.0
      %577 = vmatpush1.msra.mxu0 0.0
      %578 = vmatprep.subr.mxu0 0.0
      %579 = vmatpush1.msra.mxu0 0.0
      %580 = vmatprep.subr.mxu0 0.0
      %581 = vmatpush1.msra.mxu0 0.0
      %582 = vmatprep.subr.mxu0 0.0
      %583 = vmatpush1.msra.mxu0 0.0
      %584 = vmatprep.subr.mxu0 0.0
      %585 = vmatpush1.msra.mxu0 0.0
      %586 = vmatprep.subr.mxu0 0.0
      %587 = vmatpush1.msra.mxu0 0.0
      %588 = vmatprep.subr.mxu0 0.0
      %589 = vmatpush1.msra.mxu0 0.0
      %590 = vmatprep.subr.mxu0 0.0
      %591 = vmatpush1.msra.mxu0 0.0
      %592 = vmatprep.subr.mxu0 0.0
      %593 = vmatpush1.msra.mxu0 0.0
      %594 = vmatprep.subr.mxu0 0.0
      %595 = vmatpush1.msra.mxu0 0.0
      %596 = vmatprep.subr.mxu0 0.0
      %597 = vmatpush1.msra.mxu0 0.0
      %598 = vmatprep.subr.mxu0 0.0
      %599 = vmatpush1.msra.mxu0 0.0
      %600 = vmatprep.subr.mxu0 0.0
      %601 = vmatpush1.msra.mxu0 0.0
      %602 = vmatprep.mubr.f32.mxu0 0.0
      %603 = vmatmul.mubr.f32.gmra.mrb[0].mxu0 %v443
      %v604 = vpop.f32.mrb[0].mxu0
      %v605 = vadd.f32 0.0, %v604
      %v606 = vpop.f32.mrb[0].mxu0
      %607 = vmatprep.mubr.f32.mxu0 0.0
      %608 = vmatmul.mubr.f32.gmra.mrb[0].mxu0 %v446
      %v609 = vpop.f32.mrb[0].mxu0
      %v610 = vadd.f32 0.0, %v609
      %v611 = vpop.f32.mrb[0].mxu0
      %612 = vmatprep.mubr.f32.mxu0 0.0
      %613 = vmatmul.mubr.f32.gmra.mrb[0].mxu0 %v449
      %v614 = vpop.f32.mrb[0].mxu0
      %v615 = vadd.f32 0.0, %v614
      %v616 = vpop.f32.mrb[0].mxu0
      %617 = vmatprep.mubr.f32.mxu0 0.0
      %618 = vmatmul.mubr.f32.gmra.mrb[0].mxu0 %v452
      %v619 = vpop.f32.mrb[0].mxu0
      %v620 = vadd.f32 0.0, %v619
      %v621 = vpop.f32.mrb[0].mxu0
      %622 = vmatprep.mubr.f32.mxu0 0.0
      %623 = vmatmul.mubr.f32.gmra.mrb[0].mxu0 %v455
      %v624 = vpop.f32.mrb[0].mxu0
      %v625 = vadd.f32 0.0, %v624
      %v626 = vpop.f32.mrb[0].mxu0
      %627 = vmatprep.mubr.f32.mxu0 0.0
      %628 = vmatmul.mubr.f32.gmra.mrb[0].mxu0 %v458
      %v629 = vpop.f32.mrb[0].mxu0
      %v630 = vadd.f32 0.0, %v629
      %v631 = vpop.f32.mrb[0].mxu0
      %632 = vmatprep.mubr.f32.mxu0 0.0
      %633 = vmatmul.mubr.f32.gmra.mrb[0].mxu0 %v461
      %v634 = vpop.f32.mrb[0].mxu0
      %v635 = vadd.f32 0.0, %v634
      %v636 = vpop.f32.mrb[0].mxu0
      %637 = vmatprep.mubr.f32.mxu0 0.0
      %638 = vmatmul.mubr.f32.gmra.mrb[0].mxu0 %v464
      %v639 = vpop.f32.mrb[0].mxu0
      %v640 = vadd.f32 0.0, %v639
      %v641 = vpop.f32.mrb[0].mxu0
      %642 = vmatprep.mubr.f32.mxu0 0.0
      %643 = vmatmul.mubr.f32.gmra.mrb[0].mxu0 %v467
      %v644 = vpop.f32.mrb[0].mxu0
      %v645 = vadd.f32 0.0, %v644
      %v646 = vpop.f32.mrb[0].mxu0
      %647 = vmatprep.mubr.f32.mxu0 0.0
      %648 = vmatmul.mubr.f32.gmra.mrb[0].mxu0 %v470
      %v649 = vpop.f32.mrb[0].mxu0
      %v650 = vadd.f32 0.0, %v649
      %v651 = vpop.f32.mrb[0].mxu0
      %652 = vmatprep.mubr.f32.mxu0 0.0
      %653 = vmatmul.mubr.f32.gmra.mrb[0].mxu0 %v473
      %v654 = vpop.f32.mrb[0].mxu0
      %v655 = vadd.f32 0.0, %v654
      %v656 = vpop.f32.mrb[0].mxu0
      %657 = vmatprep.mubr.f32.mxu0 0.0
      %658 = vmatmul.mubr.f32.gmra.mrb[0].mxu0 %v476
      %v659 = vpop.f32.mrb[0].mxu0
      %v660 = vadd.f32 0.0, %v659
      %v661 = vpop.f32.mrb[0].mxu0
      %662 = vmatprep.mubr.f32.mxu0 0.0
      %663 = vmatmul.mubr.f32.gmra.mrb[0].mxu0 %v479
      %v664 = vpop.f32.mrb[0].mxu0
      %v665 = vadd.f32 0.0, %v664
      %v666 = vpop.f32.mrb[0].mxu0
      %667 = vmatprep.mubr.f32.mxu0 0.0
      %668 = vmatmul.mubr.f32.gmra.mrb[0].mxu0 %v482
      %v669 = vpop.f32.mrb[0].mxu0
      %v670 = vadd.f32 0.0, %v669
      %v671 = vpop.f32.mrb[0].mxu0
      %672 = vmatprep.mubr.f32.mxu0 0.0
      %673 = vmatmul.mubr.f32.gmra.mrb[0].mxu0 %v485
      %v674 = vpop.f32.mrb[0].mxu0
      %v675 = vadd.f32 0.0, %v674
      %v676 = vpop.f32.mrb[0].mxu0
      %677 = vmatprep.mubr.f32.mxu0 0.0
      %678 = vmatmul.mubr.f32.gmra.mrb[0].mxu0 %v488
      %v679 = vpop.f32.mrb[0].mxu0
      %v680 = vadd.f32 0.0, %v679
      %v681 = vpop.f32.mrb[0].mxu0
      %682 = vmatprep.mubr.f32.mxu0 0.0
      %683 = vmatmul.mubr.f32.gmra.mrb[0].mxu0 %v491
      %v684 = vpop.f32.mrb[0].mxu0
      %v685 = vadd.f32 0.0, %v684
      %v686 = vpop.f32.mrb[0].mxu0
      %687 = vmatprep.mubr.f32.mxu0 0.0
      %688 = vmatmul.mubr.f32.gmra.mrb[0].mxu0 %v494
      %v689 = vpop.f32.mrb[0].mxu0
      %v690 = vadd.f32 0.0, %v689
      %v691 = vpop.f32.mrb[0].mxu0
      %692 = vmatprep.mubr.f32.mxu0 0.0
      %693 = vmatmul.mubr.f32.gmra.mrb[0].mxu0 %v497
      %v694 = vpop.f32.mrb[0].mxu0
      %v695 = vadd.f32 0.0, %v694
      %v696 = vpop.f32.mrb[0].mxu0
      %697 = vmatprep.mubr.f32.mxu0 0.0
      %698 = vmatmul.mubr.f32.gmra.mrb[0].mxu0 %v500
      %v699 = vpop.f32.mrb[0].mxu0
      %v700 = vadd.f32 0.0, %v699
      %v701 = vpop.f32.mrb[0].mxu0
      %702 = vmatprep.mubr.f32.mxu0 0.0
      %703 = vmatmul.mubr.f32.gmra.mrb[0].mxu0 %v503
      %v704 = vpop.f32.mrb[0].mxu0
      %v705 = vadd.f32 0.0, %v704
      %v706 = vpop.f32.mrb[0].mxu0
      %707 = vmatprep.mubr.f32.mxu0 0.0
      %708 = vmatmul.mubr.f32.gmra.mrb[0].mxu0 %v506
      %v709 = vpop.f32.mrb[0].mxu0
      %v710 = vadd.f32 0.0, %v709
      %v711 = vpop.f32.mrb[0].mxu0
      %712 = vmatprep.mubr.f32.mxu0 0.0
      %713 = vmatmul.mubr.f32.gmra.mrb[0].mxu0 %v509
      %v714 = vpop.f32.mrb[0].mxu0
      %v715 = vadd.f32 0.0, %v714
      %v716 = vpop.f32.mrb[0].mxu0
      %717 = vmatprep.mubr.f32.mxu0 0.0
      %718 = vmatmul.mubr.f32.gmra.mrb[0].mxu0 %v512
      %v719 = vpop.f32.mrb[0].mxu0
      %v720 = vadd.f32 0.0, %v719
      %v721 = vpop.f32.mrb[0].mxu0
      %722 = vmatprep.mubr.f32.mxu0 0.0
      %723 = vmatmul.mubr.f32.gmra.mrb[0].mxu0 %v515
      %v724 = vpop.f32.mrb[0].mxu0
      %v725 = vadd.f32 0.0, %v724
      %v726 = vpop.f32.mrb[0].mxu0
      %727 = vmatprep.mubr.f32.mxu0 0.0
      %728 = vmatmul.mubr.f32.gmra.mrb[0].mxu0 %v518
      %v729 = vpop.f32.mrb[0].mxu0
      %v730 = vadd.f32 0.0, %v729
      %v731 = vpop.f32.mrb[0].mxu0
      %732 = vmatprep.mubr.f32.mxu0 0.0
      %733 = vmatmul.mubr.f32.gmra.mrb[0].mxu0 %v521
      %v734 = vpop.f32.mrb[0].mxu0
      %v735 = vadd.f32 0.0, %v734
      %v736 = vpop.f32.mrb[0].mxu0
      %737 = vmatprep.mubr.f32.mxu0 0.0
      %738 = vmatmul.mubr.f32.gmra.mrb[0].mxu0 %v524
      %v739 = vpop.f32.mrb[0].mxu0
      %v740 = vadd.f32 0.0, %v739
      %v741 = vpop.f32.mrb[0].mxu0
      %742 = vmatprep.mubr.f32.mxu0 0.0
      %743 = vmatmul.mubr.f32.gmra.mrb[0].mxu0 %v527
      %v744 = vpop.f32.mrb[0].mxu0
      %v745 = vadd.f32 0.0, %v744
      %v746 = vpop.f32.mrb[0].mxu0
      %747 = vmatprep.mubr.f32.mxu0 0.0
      %748 = vmatmul.mubr.f32.gmra.mrb[0].mxu0 %v530
      %v749 = vpop.f32.mrb[0].mxu0
      %v750 = vadd.f32 0.0, %v749
      %v751 = vpop.f32.mrb[0].mxu0
      %752 = vmatprep.mubr.f32.mxu0 0.0
      %753 = vmatmul.mubr.f32.gmra.mrb[0].mxu0 %v533
      %v754 = vpop.f32.mrb[0].mxu0
      %v755 = vadd.f32 0.0, %v754
      %v756 = vpop.f32.mrb[0].mxu0
      %757 = vmatprep.mubr.f32.mxu0 0.0
      %758 = vmatmul.mubr.f32.gmra.mrb[0].mxu0 %v536
      %v759 = vpop.f32.mrb[0].mxu0
      %v760 = vadd.f32 0.0, %v759
      %v761 = vpop.f32.mrb[0].mxu0
      %762 = vdwg.mxu0
      %v763 = vld [vmem:[%s2] sm:$0x1]
      %v765 = vlaneseq
      %v766 = vshrl.u32 %v765, 7
      %v767 = vsub.s32 0, %v766
      %v768 = vrot.slane %v763, %v767
      %v770 = vmul.f32 %v605, %v768
      %v771 = vmul.f32 %v610, %v768
      %v772 = vmul.f32 %v615, %v768
      %v773 = vmul.f32 %v620, %v768
      %v774 = vmul.f32 %v625, %v768
      %v775 = vmul.f32 %v630, %v768
      %v776 = vmul.f32 %v635, %v768
      %v777 = vmul.f32 %v640, %v768
      %v778 = vmul.f32 %v645, %v768
      %v779 = vmul.f32 %v650, %v768
      %v780 = vmul.f32 %v655, %v768
      %v781 = vmul.f32 %v660, %v768
      %v782 = vmul.f32 %v665, %v768
      %v783 = vmul.f32 %v670, %v768
      %v784 = vmul.f32 %v675, %v768
      %v785 = vmul.f32 %v680, %v768
      %v786 = vmul.f32 %v685, %v768
      %v787 = vmul.f32 %v690, %v768
      %v788 = vmul.f32 %v695, %v768
      %v789 = vmul.f32 %v700, %v768
      %v790 = vmul.f32 %v705, %v768
      %v791 = vmul.f32 %v710, %v768
      %v792 = vmul.f32 %v715, %v768
      %v793 = vmul.f32 %v720, %v768
      %v794 = vmul.f32 %v725, %v768
      %v795 = vmul.f32 %v730, %v768
      %v796 = vmul.f32 %v735, %v768
      %v797 = vmul.f32 %v740, %v768
      %v798 = vmul.f32 %v745, %v768
      %v799 = vmul.f32 %v750, %v768
      %v800 = vmul.f32 %v755, %v768
      %v801 = vmul.f32 %v760, %v768
      %v802 = vld [vmem:[%s3] sm:$0x1]
      %v804 = vlaneseq
      %v805 = vshrl.u32 %v804, 7
      %v806 = vsub.s32 0, %v805
      %v807 = vrot.slane %v802, %v806
      %v809 = vadd.f32 %v770, %v807
      %v810 = vadd.f32 %v771, %v807
      %v811 = vadd.f32 %v772, %v807
      %v812 = vadd.f32 %v773, %v807
      %v813 = vadd.f32 %v774, %v807
      %v814 = vadd.f32 %v775, %v807
      %v815 = vadd.f32 %v776, %v807
      %v816 = vadd.f32 %v777, %v807
      %v817 = vadd.f32 %v778, %v807
      %v818 = vadd.f32 %v779, %v807
      %v819 = vadd.f32 %v780, %v807
      %v820 = vadd.f32 %v781, %v807
      %v821 = vadd.f32 %v782, %v807
      %v822 = vadd.f32 %v783, %v807
      %v823 = vadd.f32 %v784, %v807
      %v824 = vadd.f32 %v785, %v807
      %v825 = vadd.f32 %v786, %v807
      %v826 = vadd.f32 %v787, %v807
      %v827 = vadd.f32 %v788, %v807
      %v828 = vadd.f32 %v789, %v807
      %v829 = vadd.f32 %v790, %v807
      %v830 = vadd.f32 %v791, %v807
      %v831 = vadd.f32 %v792, %v807
      %v832 = vadd.f32 %v793, %v807
      %v833 = vadd.f32 %v794, %v807
      %v834 = vadd.f32 %v795, %v807
      %v835 = vadd.f32 %v796, %v807
      %v836 = vadd.f32 %v797, %v807
      %v837 = vadd.f32 %v798, %v807
      %v838 = vadd.f32 %v799, %v807
      %v839 = vadd.f32 %v800, %v807
      %v840 = vadd.f32 %v801, %v807
      %v841 = vmax.f32 %v809, 0.0
      %v842 = vmax.f32 %v810, 0.0
      %v843 = vmax.f32 %v811, 0.0
      %v844 = vmax.f32 %v812, 0.0
      %v845 = vmax.f32 %v813, 0.0
      %v846 = vmax.f32 %v814, 0.0
      %v847 = vmax.f32 %v815, 0.0
      %v848 = vmax.f32 %v816, 0.0
      %v849 = vmax.f32 %v817, 0.0
      %v850 = vmax.f32 %v818, 0.0
      %v851 = vmax.f32 %v819, 0.0
      %v852 = vmax.f32 %v820, 0.0
      %v853 = vmax.f32 %v821, 0.0
      %v854 = vmax.f32 %v822, 0.0
      %v855 = vmax.f32 %v823, 0.0
      %v856 = vmax.f32 %v824, 0.0
      %v857 = vmax.f32 %v825, 0.0
      %v858 = vmax.f32 %v826, 0.0
      %v859 = vmax.f32 %v827, 0.0
      %v860 = vmax.f32 %v828, 0.0
      %v861 = vmax.f32 %v829, 0.0
      %v862 = vmax.f32 %v830, 0.0
      %v863 = vmax.f32 %v831, 0.0
      %v864 = vmax.f32 %v832, 0.0
      %v865 = vmax.f32 %v833, 0.0
      %v866 = vmax.f32 %v834, 0.0
      %v867 = vmax.f32 %v835, 0.0
      %v868 = vmax.f32 %v836, 0.0
      %v869 = vmax.f32 %v837, 0.0
      %v870 = vmax.f32 %v838, 0.0
      %v871 = vmax.f32 %v839, 0.0
      %v872 = vmax.f32 %v840, 0.0
      %v873 = vmin.f32 %v841, 6.0
      %v874 = vmin.f32 %v842, 6.0
      %v875 = vmin.f32 %v843, 6.0
      %v876 = vmin.f32 %v844, 6.0
      %v877 = vmin.f32 %v845, 6.0
      %v878 = vmin.f32 %v846, 6.0
      %v879 = vmin.f32 %v847, 6.0
      %v880 = vmin.f32 %v848, 6.0
      %v881 = vmin.f32 %v849, 6.0
      %v882 = vmin.f32 %v850, 6.0
      %v883 = vmin.f32 %v851, 6.0
      %v884 = vmin.f32 %v852, 6.0
      %v885 = vmin.f32 %v853, 6.0
      %v886 = vmin.f32 %v854, 6.0
      %v887 = vmin.f32 %v855, 6.0
      %v888 = vmin.f32 %v856, 6.0
      %v889 = vmin.f32 %v857, 6.0
      %v890 = vmin.f32 %v858, 6.0
      %v891 = vmin.f32 %v859, 6.0
      %v892 = vmin.f32 %v860, 6.0
      %v893 = vmin.f32 %v861, 6.0
      %v894 = vmin.f32 %v862, 6.0
      %v895 = vmin.f32 %v863, 6.0
      %v896 = vmin.f32 %v864, 6.0
      %v897 = vmin.f32 %v865, 6.0
      %v898 = vmin.f32 %v866, 6.0
      %v899 = vmin.f32 %v867, 6.0
      %v900 = vmin.f32 %v868, 6.0
      %v901 = vmin.f32 %v869, 6.0
      %v902 = vmin.f32 %v870, 6.0
      %v903 = vmin.f32 %v871, 6.0
      %v904 = vmin.f32 %v872, 6.0
      %vm905 = vcmask 785408
      %906 = vst.msk [vmem:[#allocation2] sm:$0xff] %vm905, 0.0
      %907 = vst.msk [vmem:[#allocation2 + $0x8] sm:$0xff] %vm905, 0.0
      %vm908 = vcmask 779264
      %909 = vst.msk [vmem:[#allocation2 + $0x10] sm:$0x3] %vm908, 0.0
      %910 = vst.msk [vmem:[#allocation2 + $0x18] sm:$0xff] %vm905, 0.0
      %911 = vst.msk [vmem:[#allocation2 + $0x20] sm:$0xff] %vm905, 0.0
      %912 = vst.msk [vmem:[#allocation2 + $0x28] sm:$0x3] %vm908, 0.0
      %913 = vst.msk [vmem:[#allocation2 + $0x30] sm:$0xff] %vm905, 0.0
      %914 = vst.msk [vmem:[#allocation2 + $0x38] sm:$0xff] %vm905, 0.0
      %915 = vst.msk [vmem:[#allocation2 + $0x40] sm:$0x3] %vm908, 0.0
      %916 = vst.msk [vmem:[#allocation2 + $0x48] sm:$0xff] %vm905, 0.0
      %917 = vst.msk [vmem:[#allocation2 + $0x50] sm:$0xff] %vm905, 0.0
      %918 = vst.msk [vmem:[#allocation2 + $0x58] sm:$0x3] %vm908, 0.0
      %919 = vst.msk [vmem:[#allocation2 + $0x60] sm:$0xff] %vm905, 0.0
      %920 = vst.msk [vmem:[#allocation2 + $0x68] sm:$0xff] %vm905, 0.0
      %921 = vst.msk [vmem:[#allocation2 + $0x70] sm:$0x3] %vm908, 0.0
      %922 = vst.msk [vmem:[#allocation2 + $0x78] sm:$0xff] %vm905, 0.0
      %923 = vst.msk [vmem:[#allocation2 + $0x80] sm:$0xff] %vm905, 0.0
      %924 = vst.msk [vmem:[#allocation2 + $0x88] sm:$0x3] %vm908, 0.0
      %925 = vst.msk [vmem:[#allocation2 + $0x90] sm:$0xff] %vm905, 0.0
      %926 = vst.msk [vmem:[#allocation2 + $0x98] sm:$0xff] %vm905, 0.0
      %927 = vst.msk [vmem:[#allocation2 + $0xa0] sm:$0x3] %vm908, 0.0
      %928 = vst.msk [vmem:[#allocation2 + $0xa8] sm:$0xff] %vm905, 0.0
      %929 = vst.msk [vmem:[#allocation2 + $0xb0] sm:$0xff] %vm905, 0.0
      %930 = vst.msk [vmem:[#allocation2 + $0xb8] sm:$0x3] %vm908, 0.0
      %931 = vst.msk [vmem:[#allocation2 + $0xc0] sm:$0xff] %vm905, 0.0
      %932 = vst.msk [vmem:[#allocation2 + $0xc8] sm:$0xff] %vm905, 0.0
      %933 = vst.msk [vmem:[#allocation2 + $0xd0] sm:$0x3] %vm908, 0.0
      %934 = vst.msk [vmem:[#allocation2 + $0xd8] sm:$0xff] %vm905, 0.0
      %935 = vst.msk [vmem:[#allocation2 + $0xe0] sm:$0xff] %vm905, 0.0
      %936 = vst.msk [vmem:[#allocation2 + $0xe8] sm:$0x3] %vm908, 0.0
      %937 = vst.msk [vmem:[#allocation2 + $0xf0] sm:$0xff] %vm905, 0.0
      %938 = vst.msk [vmem:[#allocation2 + $0xf8] sm:$0xff] %vm905, 0.0
      %939 = vst.msk [vmem:[#allocation2 + $0x100] sm:$0x3] %vm908, 0.0
      %940 = vst.msk [vmem:[#allocation2 + $0x108] sm:$0xff] %vm905, 0.0
      %941 = vst.msk [vmem:[#allocation2 + $0x110] sm:$0xff] %vm905, 0.0
      %942 = vst.msk [vmem:[#allocation2 + $0x118] sm:$0x3] %vm908, 0.0
      %943 = vst.msk [vmem:[#allocation2 + $0x120] sm:$0xff] %vm905, 0.0
      %944 = vst.msk [vmem:[#allocation2 + $0x128] sm:$0xff] %vm905, 0.0
      %945 = vst.msk [vmem:[#allocation2 + $0x130] sm:$0x3] %vm908, 0.0
      %946 = vst.msk [vmem:[#allocation2 + $0x138] sm:$0xff] %vm905, 0.0
      %947 = vst.msk [vmem:[#allocation2 + $0x140] sm:$0xff] %vm905, 0.0
      %948 = vst.msk [vmem:[#allocation2 + $0x148] sm:$0x3] %vm908, 0.0
      %949 = vst.msk [vmem:[#allocation2 + $0x150] sm:$0xff] %vm905, 0.0
      %950 = vst.msk [vmem:[#allocation2 + $0x158] sm:$0xff] %vm905, 0.0
      %951 = vst.msk [vmem:[#allocation2 + $0x160] sm:$0x3] %vm908, 0.0
      %952 = vst.msk [vmem:[#allocation2 + $0x168] sm:$0xff] %vm905, 0.0
      %953 = vst.msk [vmem:[#allocation2 + $0x170] sm:$0xff] %vm905, 0.0
      %954 = vst.msk [vmem:[#allocation2 + $0x178] sm:$0x3] %vm908, 0.0
      %955 = vst.msk [vmem:[#allocation2 + $0x180] sm:$0xff] %vm905, 0.0
      %956 = vst.msk [vmem:[#allocation2 + $0x188] sm:$0xff] %vm905, 0.0
      %957 = vst.msk [vmem:[#allocation2 + $0x190] sm:$0x3] %vm908, 0.0
      %958 = vst.msk [vmem:[#allocation2 + $0x198] sm:$0xff] %vm905, 0.0
      %959 = vst.msk [vmem:[#allocation2 + $0x1a0] sm:$0xff] %vm905, 0.0
      %960 = vst.msk [vmem:[#allocation2 + $0x1a8] sm:$0x3] %vm908, 0.0
      %s961 = scalar_lea.vmem [#allocation2], 24
      %962 = vst.msk [vmem:[%s961 + $0x1] sm:$0xff] %vm905, %v873
      %963 = vst.msk [vmem:[%s961 + $0x9] sm:$0xff] %vm905, %v874
      %964 = vst.msk [vmem:[%s961 + $0x19] sm:$0xff] %vm905, %v875
      %965 = vst.msk [vmem:[%s961 + $0x21] sm:$0xff] %vm905, %v876
      %966 = vst.msk [vmem:[%s961 + $0x31] sm:$0xff] %vm905, %v877
      %967 = vst.msk [vmem:[%s961 + $0x39] sm:$0xff] %vm905, %v878
      %968 = vst.msk [vmem:[%s961 + $0x49] sm:$0xff] %vm905, %v879
      %969 = vst.msk [vmem:[%s961 + $0x51] sm:$0xff] %vm905, %v880
      %970 = vst.msk [vmem:[%s961 + $0x61] sm:$0xff] %vm905, %v881
      %971 = vst.msk [vmem:[%s961 + $0x69] sm:$0xff] %vm905, %v882
      %972 = vst.msk [vmem:[%s961 + $0x79] sm:$0xff] %vm905, %v883
      %973 = vst.msk [vmem:[%s961 + $0x81] sm:$0xff] %vm905, %v884
      %974 = vst.msk [vmem:[%s961 + $0x91] sm:$0xff] %vm905, %v885
      %975 = vst.msk [vmem:[%s961 + $0x99] sm:$0xff] %vm905, %v886
      %976 = vst.msk [vmem:[%s961 + $0xa9] sm:$0xff] %vm905, %v887
      %977 = vst.msk [vmem:[%s961 + $0xb1] sm:$0xff] %vm905, %v888
      %978 = vst.msk [vmem:[%s961 + $0xc1] sm:$0xff] %vm905, %v889
      %979 = vst.msk [vmem:[%s961 + $0xc9] sm:$0xff] %vm905, %v890
      %980 = vst.msk [vmem:[%s961 + $0xd9] sm:$0xff] %vm905, %v891
      %981 = vst.msk [vmem:[%s961 + $0xe1] sm:$0xff] %vm905, %v892
      %982 = vst.msk [vmem:[%s961 + $0xf1] sm:$0xff] %vm905, %v893
      %983 = vst.msk [vmem:[%s961 + $0xf9] sm:$0xff] %vm905, %v894
      %984 = vst.msk [vmem:[%s961 + $0x109] sm:$0xff] %vm905, %v895
      %985 = vst.msk [vmem:[%s961 + $0x111] sm:$0xff] %vm905, %v896
      %986 = vst.msk [vmem:[%s961 + $0x121] sm:$0xff] %vm905, %v897
      %987 = vst.msk [vmem:[%s961 + $0x129] sm:$0xff] %vm905, %v898
      %988 = vst.msk [vmem:[%s961 + $0x139] sm:$0xff] %vm905, %v899
      %989 = vst.msk [vmem:[%s961 + $0x141] sm:$0xff] %vm905, %v900
      %990 = vst.msk [vmem:[%s961 + $0x151] sm:$0xff] %vm905, %v901
      %991 = vst.msk [vmem:[%s961 + $0x159] sm:$0xff] %vm905, %v902
      %992 = vst.msk [vmem:[%s961 + $0x169] sm:$0xff] %vm905, %v903
      %993 = vst.msk [vmem:[%s961 + $0x171] sm:$0xff] %vm905, %v904
      %v994 = vld [vmem:[#allocation2] sm:$0xff]
      %v995 = vld [vmem:[#allocation2 + $0x8] sm:$0xff]
      %v996 = vld [vmem:[#allocation2 + $0x18] sm:$0xff]
      %v997 = vld [vmem:[#allocation2 + $0x20] sm:$0xff]
      %v998 = vld [vmem:[#allocation2 + $0x30] sm:$0xff]
      %v999 = vld [vmem:[#allocation2 + $0x38] sm:$0xff]
      %v1000 = vld [vmem:[#allocation2 + $0x48] sm:$0xff]
      %v1001 = vld [vmem:[#allocation2 + $0x50] sm:$0xff]
      %v1002 = vld [vmem:[#allocation2 + $0x60] sm:$0xff]
      %v1003 = vld [vmem:[#allocation2 + $0x68] sm:$0xff]
      %v1004 = vld [vmem:[#allocation2 + $0x78] sm:$0xff]
      %v1005 = vld [vmem:[#allocation2 + $0x80] sm:$0xff]
      %v1006 = vld [vmem:[#allocation2 + $0x90] sm:$0xff]
      %v1007 = vld [vmem:[#allocation2 + $0x98] sm:$0xff]
      %v1008 = vld [vmem:[#allocation2 + $0xa8] sm:$0xff]
      %v1009 = vld [vmem:[#allocation2 + $0xb0] sm:$0xff]
      %v1010 = vld [vmem:[#allocation2 + $0xc0] sm:$0xff]
      %v1011 = vld [vmem:[#allocation2 + $0xc8] sm:$0xff]
      %v1012 = vld [vmem:[#allocation2 + $0xd8] sm:$0xff]
      %v1013 = vld [vmem:[#allocation2 + $0xe0] sm:$0xff]
      %v1014 = vld [vmem:[#allocation2 + $0xf0] sm:$0xff]
      %v1015 = vld [vmem:[#allocation2 + $0xf8] sm:$0xff]
      %v1016 = vld [vmem:[#allocation2 + $0x108] sm:$0xff]
      %v1017 = vld [vmem:[#allocation2 + $0x110] sm:$0xff]
      %v1018 = vld [vmem:[#allocation2 + $0x120] sm:$0xff]
      %v1019 = vld [vmem:[#allocation2 + $0x128] sm:$0xff]
      %v1020 = vld [vmem:[#allocation2 + $0x138] sm:$0xff]
      %v1021 = vld [vmem:[#allocation2 + $0x140] sm:$0xff]
      %v1022 = vld [vmem:[#allocation2 + $0x150] sm:$0xff]
      %v1023 = vld [vmem:[#allocation2 + $0x158] sm:$0xff]
      %v1024 = vld [vmem:[#allocation2 + $0x168] sm:$0xff]
      %v1025 = vld [vmem:[#allocation2 + $0x170] sm:$0xff]
      %v1026 = vld [vmem:[%s4] sm:$0x1]
      %v1027 = vlaneseq
      %v1028 = vshrl.u32 %v1027, 7
      %v1029 = vsub.s32 0, %v1028
      %v1030 = vrot.slane %v1026, %v1029
      %v1031 = vmul.f32 %v994, %v1030
      %v1032 = vmul.f32 %v995, %v1030
      %v1033 = vmul.f32 %v996, %v1030
      %v1034 = vmul.f32 %v997, %v1030
      %v1035 = vmul.f32 %v998, %v1030
      %v1036 = vmul.f32 %v999, %v1030
      %v1037 = vmul.f32 %v1000, %v1030
      %v1038 = vmul.f32 %v1001, %v1030
      %v1039 = vmul.f32 %v1002, %v1030
      %v1040 = vmul.f32 %v1003, %v1030
      %v1041 = vmul.f32 %v1004, %v1030
      %v1042 = vmul.f32 %v1005, %v1030
      %v1043 = vmul.f32 %v1006, %v1030
      %v1044 = vmul.f32 %v1007, %v1030
      %v1045 = vmul.f32 %v1008, %v1030
      %v1046 = vmul.f32 %v1009, %v1030
      %v1047 = vmul.f32 %v1010, %v1030
      %v1048 = vmul.f32 %v1011, %v1030
      %v1049 = vmul.f32 %v1012, %v1030
      %v1050 = vmul.f32 %v1013, %v1030
      %v1051 = vmul.f32 %v1014, %v1030
      %v1052 = vmul.f32 %v1015, %v1030
      %v1053 = vmul.f32 %v1016, %v1030
      %v1054 = vmul.f32 %v1017, %v1030
      %v1055 = vmul.f32 %v1018, %v1030
      %v1056 = vmul.f32 %v1019, %v1030
      %v1057 = vmul.f32 %v1020, %v1030
      %v1058 = vmul.f32 %v1021, %v1030
      %v1059 = vmul.f32 %v1022, %v1030
      %v1060 = vmul.f32 %v1023, %v1030
      %v1061 = vmul.f32 %v1024, %v1030
      %v1062 = vmul.f32 %v1025, %v1030
      %v1063 = vadd.f32 %v1031, 0.0
      %v1064 = vadd.f32 %v1032, 0.0
      %v1065 = vadd.f32 %v1033, 0.0
      %v1066 = vadd.f32 %v1034, 0.0
      %v1067 = vadd.f32 %v1035, 0.0
      %v1068 = vadd.f32 %v1036, 0.0
      %v1069 = vadd.f32 %v1037, 0.0
      %v1070 = vadd.f32 %v1038, 0.0
      %v1071 = vadd.f32 %v1039, 0.0
      %v1072 = vadd.f32 %v1040, 0.0
      %v1073 = vadd.f32 %v1041, 0.0
      %v1074 = vadd.f32 %v1042, 0.0
      %v1075 = vadd.f32 %v1043, 0.0
      %v1076 = vadd.f32 %v1044, 0.0
      %v1077 = vadd.f32 %v1045, 0.0
      %v1078 = vadd.f32 %v1046, 0.0
      %v1079 = vadd.f32 %v1047, 0.0
      %v1080 = vadd.f32 %v1048, 0.0
      %v1081 = vadd.f32 %v1049, 0.0
      %v1082 = vadd.f32 %v1050, 0.0
      %v1083 = vadd.f32 %v1051, 0.0
      %v1084 = vadd.f32 %v1052, 0.0
      %v1085 = vadd.f32 %v1053, 0.0
      %v1086 = vadd.f32 %v1054, 0.0
      %v1087 = vadd.f32 %v1055, 0.0
      %v1088 = vadd.f32 %v1056, 0.0
      %v1089 = vadd.f32 %v1057, 0.0
      %v1090 = vadd.f32 %v1058, 0.0
      %v1091 = vadd.f32 %v1059, 0.0
      %v1092 = vadd.f32 %v1060, 0.0
      %v1093 = vadd.f32 %v1061, 0.0
      %v1094 = vadd.f32 %v1062, 0.0
      %v1095 = vld [vmem:[#allocation2 + $0x1] sm:$0xff]
      %v1096 = vld [vmem:[#allocation2 + $0x9] sm:$0xff]
      %v1097 = vld [vmem:[#allocation2 + $0x19] sm:$0xff]
      %v1098 = vld [vmem:[#allocation2 + $0x21] sm:$0xff]
      %v1099 = vld [vmem:[#allocation2 + $0x31] sm:$0xff]
      %v1100 = vld [vmem:[#allocation2 + $0x39] sm:$0xff]
      %v1101 = vld [vmem:[#allocation2 + $0x49] sm:$0xff]
      %v1102 = vld [vmem:[#allocation2 + $0x51] sm:$0xff]
      %v1103 = vld [vmem:[#allocation2 + $0x61] sm:$0xff]
      %v1104 = vld [vmem:[#allocation2 + $0x69] sm:$0xff]
      %v1105 = vld [vmem:[#allocation2 + $0x79] sm:$0xff]
      %v1106 = vld [vmem:[#allocation2 + $0x81] sm:$0xff]
      %v1107 = vld [vmem:[#allocation2 + $0x91] sm:$0xff]
      %v1108 = vld [vmem:[#allocation2 + $0x99] sm:$0xff]
      %v1109 = vld [vmem:[#allocation2 + $0xa9] sm:$0xff]
      %v1110 = vld [vmem:[#allocation2 + $0xb1] sm:$0xff]
      %v1111 = vld [vmem:[#allocation2 + $0xc1] sm:$0xff]
      %v1112 = vld [vmem:[#allocation2 + $0xc9] sm:$0xff]
      %v1113 = vld [vmem:[#allocation2 + $0xd9] sm:$0xff]
      %v1114 = vld [vmem:[#allocation2 + $0xe1] sm:$0xff]
      %v1115 = vld [vmem:[#allocation2 + $0xf1] sm:$0xff]
      %v1116 = vld [vmem:[#allocation2 + $0xf9] sm:$0xff]
      %v1117 = vld [vmem:[#allocation2 + $0x109] sm:$0xff]
      %v1118 = vld [vmem:[#allocation2 + $0x111] sm:$0xff]
      %v1119 = vld [vmem:[#allocation2 + $0x121] sm:$0xff]
      %v1120 = vld [vmem:[#allocation2 + $0x129] sm:$0xff]
      %v1121 = vld [vmem:[#allocation2 + $0x139] sm:$0xff]
      %v1122 = vld [vmem:[#allocation2 + $0x141] sm:$0xff]
      %v1123 = vld [vmem:[#allocation2 + $0x151] sm:$0xff]
      %v1124 = vld [vmem:[#allocation2 + $0x159] sm:$0xff]
      %v1125 = vld [vmem:[#allocation2 + $0x169] sm:$0xff]
      %v1126 = vld [vmem:[#allocation2 + $0x171] sm:$0xff]
      %v1127 = vld [vmem:[%s4 + $0x1] sm:$0x1]
      %v1128 = vlaneseq
      %v1129 = vshrl.u32 %v1128, 7
      %v1130 = vsub.s32 0, %v1129
      %v1131 = vrot.slane %v1127, %v1130
      %v1132 = vmul.f32 %v1095, %v1131
      %v1133 = vmul.f32 %v1096, %v1131
      %v1134 = vmul.f32 %v1097, %v1131
      %v1135 = vmul.f32 %v1098, %v1131
      %v1136 = vmul.f32 %v1099, %v1131
      %v1137 = vmul.f32 %v1100, %v1131
      %v1138 = vmul.f32 %v1101, %v1131
      %v1139 = vmul.f32 %v1102, %v1131
      %v1140 = vmul.f32 %v1103, %v1131
      %v1141 = vmul.f32 %v1104, %v1131
      %v1142 = vmul.f32 %v1105, %v1131
      %v1143 = vmul.f32 %v1106, %v1131
      %v1144 = vmul.f32 %v1107, %v1131
      %v1145 = vmul.f32 %v1108, %v1131
      %v1146 = vmul.f32 %v1109, %v1131
      %v1147 = vmul.f32 %v1110, %v1131
      %v1148 = vmul.f32 %v1111, %v1131
      %v1149 = vmul.f32 %v1112, %v1131
      %v1150 = vmul.f32 %v1113, %v1131
      %v1151 = vmul.f32 %v1114, %v1131
      %v1152 = vmul.f32 %v1115, %v1131
      %v1153 = vmul.f32 %v1116, %v1131
      %v1154 = vmul.f32 %v1117, %v1131
      %v1155 = vmul.f32 %v1118, %v1131
      %v1156 = vmul.f32 %v1119, %v1131
      %v1157 = vmul.f32 %v1120, %v1131
      %v1158 = vmul.f32 %v1121, %v1131
      %v1159 = vmul.f32 %v1122, %v1131
      %v1160 = vmul.f32 %v1123, %v1131
      %v1161 = vmul.f32 %v1124, %v1131
      %v1162 = vmul.f32 %v1125, %v1131
      %v1163 = vmul.f32 %v1126, %v1131
      %v1164 = vadd.f32 %v1063, %v1132
      %v1165 = vadd.f32 %v1064, %v1133
      %v1166 = vadd.f32 %v1065, %v1134
      %v1167 = vadd.f32 %v1066, %v1135
      %v1168 = vadd.f32 %v1067, %v1136
      %v1169 = vadd.f32 %v1068, %v1137
      %v1170 = vadd.f32 %v1069, %v1138
      %v1171 = vadd.f32 %v1070, %v1139
      %v1172 = vadd.f32 %v1071, %v1140
      %v1173 = vadd.f32 %v1072, %v1141
      %v1174 = vadd.f32 %v1073, %v1142
      %v1175 = vadd.f32 %v1074, %v1143
      %v1176 = vadd.f32 %v1075, %v1144
      %v1177 = vadd.f32 %v1076, %v1145
      %v1178 = vadd.f32 %v1077, %v1146
      %v1179 = vadd.f32 %v1078, %v1147
      %v1180 = vadd.f32 %v1079, %v1148
      %v1181 = vadd.f32 %v1080, %v1149
      %v1182 = vadd.f32 %v1081, %v1150
      %v1183 = vadd.f32 %v1082, %v1151
      %v1184 = vadd.f32 %v1083, %v1152
      %v1185 = vadd.f32 %v1084, %v1153
      %v1186 = vadd.f32 %v1085, %v1154
      %v1187 = vadd.f32 %v1086, %v1155
      %v1188 = vadd.f32 %v1087, %v1156
      %v1189 = vadd.f32 %v1088, %v1157
      %v1190 = vadd.f32 %v1089, %v1158
      %v1191 = vadd.f32 %v1090, %v1159
      %v1192 = vadd.f32 %v1091, %v1160
      %v1193 = vadd.f32 %v1092, %v1161
      %v1194 = vadd.f32 %v1093, %v1162
      %v1195 = vadd.f32 %v1094, %v1163
      %v1196 = vld [vmem:[#allocation2 + $0x2] sm:$0xff]
      %v1197 = vld [vmem:[#allocation2 + $0xa] sm:$0xff]
      %v1198 = vld [vmem:[#allocation2 + $0x1a] sm:$0xff]
      %v1199 = vld [vmem:[#allocation2 + $0x22] sm:$0xff]
      %v1200 = vld [vmem:[#allocation2 + $0x32] sm:$0xff]
      %v1201 = vld [vmem:[#allocation2 + $0x3a] sm:$0xff]
      %v1202 = vld [vmem:[#allocation2 + $0x4a] sm:$0xff]
      %v1203 = vld [vmem:[#allocation2 + $0x52] sm:$0xff]
      %v1204 = vld [vmem:[#allocation2 + $0x62] sm:$0xff]
      %v1205 = vld [vmem:[#allocation2 + $0x6a] sm:$0xff]
      %v1206 = vld [vmem:[#allocation2 + $0x7a] sm:$0xff]
      %v1207 = vld [vmem:[#allocation2 + $0x82] sm:$0xff]
      %v1208 = vld [vmem:[#allocation2 + $0x92] sm:$0xff]
      %v1209 = vld [vmem:[#allocation2 + $0x9a] sm:$0xff]
      %v1210 = vld [vmem:[#allocation2 + $0xaa] sm:$0xff]
      %v1211 = vld [vmem:[#allocation2 + $0xb2] sm:$0xff]
      %v1212 = vld [vmem:[#allocation2 + $0xc2] sm:$0xff]
      %v1213 = vld [vmem:[#allocation2 + $0xca] sm:$0xff]
      %v1214 = vld [vmem:[#allocation2 + $0xda] sm:$0xff]
      %v1215 = vld [vmem:[#allocation2 + $0xe2] sm:$0xff]
      %v1216 = vld [vmem:[#allocation2 + $0xf2] sm:$0xff]
      %v1217 = vld [vmem:[#allocation2 + $0xfa] sm:$0xff]
      %v1218 = vld [vmem:[#allocation2 + $0x10a] sm:$0xff]
      %v1219 = vld [vmem:[#allocation2 + $0x112] sm:$0xff]
      %v1220 = vld [vmem:[#allocation2 + $0x122] sm:$0xff]
      %v1221 = vld [vmem:[#allocation2 + $0x12a] sm:$0xff]
      %v1222 = vld [vmem:[#allocation2 + $0x13a] sm:$0xff]
      %v1223 = vld [vmem:[#allocation2 + $0x142] sm:$0xff]
      %v1224 = vld [vmem:[#allocation2 + $0x152] sm:$0xff]
      %v1225 = vld [vmem:[#allocation2 + $0x15a] sm:$0xff]
      %v1226 = vld [vmem:[#allocation2 + $0x16a] sm:$0xff]
      %v1227 = vld [vmem:[#allocation2 + $0x172] sm:$0xff]
      %v1228 = vld [vmem:[%s4 + $0x2] sm:$0x1]
      %v1229 = vlaneseq
      %v1230 = vshrl.u32 %v1229, 7
      %v1231 = vsub.s32 0, %v1230
      %v1232 = vrot.slane %v1228, %v1231
      %v1233 = vmul.f32 %v1196, %v1232
      %v1234 = vmul.f32 %v1197, %v1232
      %v1235 = vmul.f32 %v1198, %v1232
      %v1236 = vmul.f32 %v1199, %v1232
      %v1237 = vmul.f32 %v1200, %v1232
      %v1238 = vmul.f32 %v1201, %v1232
      %v1239 = vmul.f32 %v1202, %v1232
      %v1240 = vmul.f32 %v1203, %v1232
      %v1241 = vmul.f32 %v1204, %v1232
      %v1242 = vmul.f32 %v1205, %v1232
      %v1243 = vmul.f32 %v1206, %v1232
      %v1244 = vmul.f32 %v1207, %v1232
      %v1245 = vmul.f32 %v1208, %v1232
      %v1246 = vmul.f32 %v1209, %v1232
      %v1247 = vmul.f32 %v1210, %v1232
      %v1248 = vmul.f32 %v1211, %v1232
      %v1249 = vmul.f32 %v1212, %v1232
      %v1250 = vmul.f32 %v1213, %v1232
      %v1251 = vmul.f32 %v1214, %v1232
      %v1252 = vmul.f32 %v1215, %v1232
      %v1253 = vmul.f32 %v1216, %v1232
      %v1254 = vmul.f32 %v1217, %v1232
      %v1255 = vmul.f32 %v1218, %v1232
      %v1256 = vmul.f32 %v1219, %v1232
      %v1257 = vmul.f32 %v1220, %v1232
      %v1258 = vmul.f32 %v1221, %v1232
      %v1259 = vmul.f32 %v1222, %v1232
      %v1260 = vmul.f32 %v1223, %v1232
      %v1261 = vmul.f32 %v1224, %v1232
      %v1262 = vmul.f32 %v1225, %v1232
      %v1263 = vmul.f32 %v1226, %v1232
      %v1264 = vmul.f32 %v1227, %v1232
      %v1265 = vadd.f32 %v1164, %v1233
      %v1266 = vadd.f32 %v1165, %v1234
      %v1267 = vadd.f32 %v1166, %v1235
      %v1268 = vadd.f32 %v1167, %v1236
      %v1269 = vadd.f32 %v1168, %v1237
      %v1270 = vadd.f32 %v1169, %v1238
      %v1271 = vadd.f32 %v1170, %v1239
      %v1272 = vadd.f32 %v1171, %v1240
      %v1273 = vadd.f32 %v1172, %v1241
      %v1274 = vadd.f32 %v1173, %v1242
      %v1275 = vadd.f32 %v1174, %v1243
      %v1276 = vadd.f32 %v1175, %v1244
      %v1277 = vadd.f32 %v1176, %v1245
      %v1278 = vadd.f32 %v1177, %v1246
      %v1279 = vadd.f32 %v1178, %v1247
      %v1280 = vadd.f32 %v1179, %v1248
      %v1281 = vadd.f32 %v1180, %v1249
      %v1282 = vadd.f32 %v1181, %v1250
      %v1283 = vadd.f32 %v1182, %v1251
      %v1284 = vadd.f32 %v1183, %v1252
      %v1285 = vadd.f32 %v1184, %v1253
      %v1286 = vadd.f32 %v1185, %v1254
      %v1287 = vadd.f32 %v1186, %v1255
      %v1288 = vadd.f32 %v1187, %v1256
      %v1289 = vadd.f32 %v1188, %v1257
      %v1290 = vadd.f32 %v1189, %v1258
      %v1291 = vadd.f32 %v1190, %v1259
      %v1292 = vadd.f32 %v1191, %v1260
      %v1293 = vadd.f32 %v1192, %v1261
      %v1294 = vadd.f32 %v1193, %v1262
      %v1295 = vadd.f32 %v1194, %v1263
      %v1296 = vadd.f32 %v1195, %v1264
      %v1297 = vld [vmem:[%s961] sm:$0xff]
      %v1298 = vld [vmem:[%s961 + $0x8] sm:$0xff]
      %v1299 = vld [vmem:[%s961 + $0x18] sm:$0xff]
      %v1300 = vld [vmem:[%s961 + $0x20] sm:$0xff]
      %v1301 = vld [vmem:[%s961 + $0x30] sm:$0xff]
      %v1302 = vld [vmem:[%s961 + $0x38] sm:$0xff]
      %v1303 = vld [vmem:[%s961 + $0x48] sm:$0xff]
      %v1304 = vld [vmem:[%s961 + $0x50] sm:$0xff]
      %v1305 = vld [vmem:[%s961 + $0x60] sm:$0xff]
      %v1306 = vld [vmem:[%s961 + $0x68] sm:$0xff]
      %v1307 = vld [vmem:[%s961 + $0x78] sm:$0xff]
      %v1308 = vld [vmem:[%s961 + $0x80] sm:$0xff]
      %v1309 = vld [vmem:[%s961 + $0x90] sm:$0xff]
      %v1310 = vld [vmem:[%s961 + $0x98] sm:$0xff]
      %v1311 = vld [vmem:[%s961 + $0xa8] sm:$0xff]
      %v1312 = vld [vmem:[%s961 + $0xb0] sm:$0xff]
      %v1313 = vld [vmem:[%s961 + $0xc0] sm:$0xff]
      %v1314 = vld [vmem:[%s961 + $0xc8] sm:$0xff]
      %v1315 = vld [vmem:[%s961 + $0xd8] sm:$0xff]
      %v1316 = vld [vmem:[%s961 + $0xe0] sm:$0xff]
      %v1317 = vld [vmem:[%s961 + $0xf0] sm:$0xff]
      %v1318 = vld [vmem:[%s961 + $0xf8] sm:$0xff]
      %v1319 = vld [vmem:[%s961 + $0x108] sm:$0xff]
      %v1320 = vld [vmem:[%s961 + $0x110] sm:$0xff]
      %v1321 = vld [vmem:[%s961 + $0x120] sm:$0xff]
      %v1322 = vld [vmem:[%s961 + $0x128] sm:$0xff]
      %v1323 = vld [vmem:[%s961 + $0x138] sm:$0xff]
      %v1324 = vld [vmem:[%s961 + $0x140] sm:$0xff]
      %v1325 = vld [vmem:[%s961 + $0x150] sm:$0xff]
      %v1326 = vld [vmem:[%s961 + $0x158] sm:$0xff]
      %v1327 = vld [vmem:[%s961 + $0x168] sm:$0xff]
      %v1328 = vld [vmem:[%s961 + $0x170] sm:$0xff]
      %v1329 = vld [vmem:[%s4 + $0x3] sm:$0x1]
      %v1330 = vlaneseq
      %v1331 = vshrl.u32 %v1330, 7
      %v1332 = vsub.s32 0, %v1331
      %v1333 = vrot.slane %v1329, %v1332
      %v1334 = vmul.f32 %v1297, %v1333
      %v1335 = vmul.f32 %v1298, %v1333
      %v1336 = vmul.f32 %v1299, %v1333
      %v1337 = vmul.f32 %v1300, %v1333
      %v1338 = vmul.f32 %v1301, %v1333
      %v1339 = vmul.f32 %v1302, %v1333
      %v1340 = vmul.f32 %v1303, %v1333
      %v1341 = vmul.f32 %v1304, %v1333
      %v1342 = vmul.f32 %v1305, %v1333
      %v1343 = vmul.f32 %v1306, %v1333
      %v1344 = vmul.f32 %v1307, %v1333
      %v1345 = vmul.f32 %v1308, %v1333
      %v1346 = vmul.f32 %v1309, %v1333
      %v1347 = vmul.f32 %v1310, %v1333
      %v1348 = vmul.f32 %v1311, %v1333
      %v1349 = vmul.f32 %v1312, %v1333
      %v1350 = vmul.f32 %v1313, %v1333
      %v1351 = vmul.f32 %v1314, %v1333
      %v1352 = vmul.f32 %v1315, %v1333
      %v1353 = vmul.f32 %v1316, %v1333
      %v1354 = vmul.f32 %v1317, %v1333
      %v1355 = vmul.f32 %v1318, %v1333
      %v1356 = vmul.f32 %v1319, %v1333
      %v1357 = vmul.f32 %v1320, %v1333
      %v1358 = vmul.f32 %v1321, %v1333
      %v1359 = vmul.f32 %v1322, %v1333
      %v1360 = vmul.f32 %v1323, %v1333
      %v1361 = vmul.f32 %v1324, %v1333
      %v1362 = vmul.f32 %v1325, %v1333
      %v1363 = vmul.f32 %v1326, %v1333
      %v1364 = vmul.f32 %v1327, %v1333
      %v1365 = vmul.f32 %v1328, %v1333
      %v1366 = vadd.f32 %v1265, %v1334
      %v1367 = vadd.f32 %v1266, %v1335
      %v1368 = vadd.f32 %v1267, %v1336
      %v1369 = vadd.f32 %v1268, %v1337
      %v1370 = vadd.f32 %v1269, %v1338
      %v1371 = vadd.f32 %v1270, %v1339
      %v1372 = vadd.f32 %v1271, %v1340
      %v1373 = vadd.f32 %v1272, %v1341
      %v1374 = vadd.f32 %v1273, %v1342
      %v1375 = vadd.f32 %v1274, %v1343
      %v1376 = vadd.f32 %v1275, %v1344
      %v1377 = vadd.f32 %v1276, %v1345
      %v1378 = vadd.f32 %v1277, %v1346
      %v1379 = vadd.f32 %v1278, %v1347
      %v1380 = vadd.f32 %v1279, %v1348
      %v1381 = vadd.f32 %v1280, %v1349
      %v1382 = vadd.f32 %v1281, %v1350
      %v1383 = vadd.f32 %v1282, %v1351
      %v1384 = vadd.f32 %v1283, %v1352
      %v1385 = vadd.f32 %v1284, %v1353
      %v1386 = vadd.f32 %v1285, %v1354
      %v1387 = vadd.f32 %v1286, %v1355
      %v1388 = vadd.f32 %v1287, %v1356
      %v1389 = vadd.f32 %v1288, %v1357
      %v1390 = vadd.f32 %v1289, %v1358
      %v1391 = vadd.f32 %v1290, %v1359
      %v1392 = vadd.f32 %v1291, %v1360
      %v1393 = vadd.f32 %v1292, %v1361
      %v1394 = vadd.f32 %v1293, %v1362
      %v1395 = vadd.f32 %v1294, %v1363
      %v1396 = vadd.f32 %v1295, %v1364
      %v1397 = vadd.f32 %v1296, %v1365
      %v1398 = vld [vmem:[%s961 + $0x1] sm:$0xff]
      %v1399 = vld [vmem:[%s961 + $0x9] sm:$0xff]
      %v1400 = vld [vmem:[%s961 + $0x19] sm:$0xff]
      %v1401 = vld [vmem:[%s961 + $0x21] sm:$0xff]
      %v1402 = vld [vmem:[%s961 + $0x31] sm:$0xff]
      %v1403 = vld [vmem:[%s961 + $0x39] sm:$0xff]
      %v1404 = vld [vmem:[%s961 + $0x49] sm:$0xff]
      %v1405 = vld [vmem:[%s961 + $0x51] sm:$0xff]
      %v1406 = vld [vmem:[%s961 + $0x61] sm:$0xff]
      %v1407 = vld [vmem:[%s961 + $0x69] sm:$0xff]
      %v1408 = vld [vmem:[%s961 + $0x79] sm:$0xff]
      %v1409 = vld [vmem:[%s961 + $0x81] sm:$0xff]
      %v1410 = vld [vmem:[%s961 + $0x91] sm:$0xff]
      %v1411 = vld [vmem:[%s961 + $0x99] sm:$0xff]
      %v1412 = vld [vmem:[%s961 + $0xa9] sm:$0xff]
      %v1413 = vld [vmem:[%s961 + $0xb1] sm:$0xff]
      %v1414 = vld [vmem:[%s961 + $0xc1] sm:$0xff]
      %v1415 = vld [vmem:[%s961 + $0xc9] sm:$0xff]
      %v1416 = vld [vmem:[%s961 + $0xd9] sm:$0xff]
      %v1417 = vld [vmem:[%s961 + $0xe1] sm:$0xff]
      %v1418 = vld [vmem:[%s961 + $0xf1] sm:$0xff]
      %v1419 = vld [vmem:[%s961 + $0xf9] sm:$0xff]
      %v1420 = vld [vmem:[%s961 + $0x109] sm:$0xff]
      %v1421 = vld [vmem:[%s961 + $0x111] sm:$0xff]
      %v1422 = vld [vmem:[%s961 + $0x121] sm:$0xff]
      %v1423 = vld [vmem:[%s961 + $0x129] sm:$0xff]
      %v1424 = vld [vmem:[%s961 + $0x139] sm:$0xff]
      %v1425 = vld [vmem:[%s961 + $0x141] sm:$0xff]
      %v1426 = vld [vmem:[%s961 + $0x151] sm:$0xff]
      %v1427 = vld [vmem:[%s961 + $0x159] sm:$0xff]
      %v1428 = vld [vmem:[%s961 + $0x169] sm:$0xff]
      %v1429 = vld [vmem:[%s961 + $0x171] sm:$0xff]
      %v1430 = vld [vmem:[%s4 + $0x4] sm:$0x1]
      %v1431 = vlaneseq
      %v1432 = vshrl.u32 %v1431, 7
      %v1433 = vsub.s32 0, %v1432
      %v1434 = vrot.slane %v1430, %v1433
      %v1435 = vmul.f32 %v1398, %v1434
      %v1436 = vmul.f32 %v1399, %v1434
      %v1437 = vmul.f32 %v1400, %v1434
      %v1438 = vmul.f32 %v1401, %v1434
      %v1439 = vmul.f32 %v1402, %v1434
      %v1440 = vmul.f32 %v1403, %v1434
      %v1441 = vmul.f32 %v1404, %v1434
      %v1442 = vmul.f32 %v1405, %v1434
      %v1443 = vmul.f32 %v1406, %v1434
      %v1444 = vmul.f32 %v1407, %v1434
      %v1445 = vmul.f32 %v1408, %v1434
      %v1446 = vmul.f32 %v1409, %v1434
      %v1447 = vmul.f32 %v1410, %v1434
      %v1448 = vmul.f32 %v1411, %v1434
      %v1449 = vmul.f32 %v1412, %v1434
      %v1450 = vmul.f32 %v1413, %v1434
      %v1451 = vmul.f32 %v1414, %v1434
      %v1452 = vmul.f32 %v1415, %v1434
      %v1453 = vmul.f32 %v1416, %v1434
      %v1454 = vmul.f32 %v1417, %v1434
      %v1455 = vmul.f32 %v1418, %v1434
      %v1456 = vmul.f32 %v1419, %v1434
      %v1457 = vmul.f32 %v1420, %v1434
      %v1458 = vmul.f32 %v1421, %v1434
      %v1459 = vmul.f32 %v1422, %v1434
      %v1460 = vmul.f32 %v1423, %v1434
      %v1461 = vmul.f32 %v1424, %v1434
      %v1462 = vmul.f32 %v1425, %v1434
      %v1463 = vmul.f32 %v1426, %v1434
      %v1464 = vmul.f32 %v1427, %v1434
      %v1465 = vmul.f32 %v1428, %v1434
      %v1466 = vmul.f32 %v1429, %v1434
      %v1467 = vadd.f32 %v1366, %v1435
      %v1468 = vadd.f32 %v1367, %v1436
      %v1469 = vadd.f32 %v1368, %v1437
      %v1470 = vadd.f32 %v1369, %v1438
      %v1471 = vadd.f32 %v1370, %v1439
      %v1472 = vadd.f32 %v1371, %v1440
      %v1473 = vadd.f32 %v1372, %v1441
      %v1474 = vadd.f32 %v1373, %v1442
      %v1475 = vadd.f32 %v1374, %v1443
      %v1476 = vadd.f32 %v1375, %v1444
      %v1477 = vadd.f32 %v1376, %v1445
      %v1478 = vadd.f32 %v1377, %v1446
      %v1479 = vadd.f32 %v1378, %v1447
      %v1480 = vadd.f32 %v1379, %v1448
      %v1481 = vadd.f32 %v1380, %v1449
      %v1482 = vadd.f32 %v1381, %v1450
      %v1483 = vadd.f32 %v1382, %v1451
      %v1484 = vadd.f32 %v1383, %v1452
      %v1485 = vadd.f32 %v1384, %v1453
      %v1486 = vadd.f32 %v1385, %v1454
      %v1487 = vadd.f32 %v1386, %v1455
      %v1488 = vadd.f32 %v1387, %v1456
      %v1489 = vadd.f32 %v1388, %v1457
      %v1490 = vadd.f32 %v1389, %v1458
      %v1491 = vadd.f32 %v1390, %v1459
      %v1492 = vadd.f32 %v1391, %v1460
      %v1493 = vadd.f32 %v1392, %v1461
      %v1494 = vadd.f32 %v1393, %v1462
      %v1495 = vadd.f32 %v1394, %v1463
      %v1496 = vadd.f32 %v1395, %v1464
      %v1497 = vadd.f32 %v1396, %v1465
      %v1498 = vadd.f32 %v1397, %v1466
      %v1499 = vld [vmem:[%s961 + $0x2] sm:$0xff]
      %v1500 = vld [vmem:[%s961 + $0xa] sm:$0xff]
      %v1501 = vld [vmem:[%s961 + $0x1a] sm:$0xff]
      %v1502 = vld [vmem:[%s961 + $0x22] sm:$0xff]
      %v1503 = vld [vmem:[%s961 + $0x32] sm:$0xff]
      %v1504 = vld [vmem:[%s961 + $0x3a] sm:$0xff]
      %v1505 = vld [vmem:[%s961 + $0x4a] sm:$0xff]
      %v1506 = vld [vmem:[%s961 + $0x52] sm:$0xff]
      %v1507 = vld [vmem:[%s961 + $0x62] sm:$0xff]
      %v1508 = vld [vmem:[%s961 + $0x6a] sm:$0xff]
      %v1509 = vld [vmem:[%s961 + $0x7a] sm:$0xff]
      %v1510 = vld [vmem:[%s961 + $0x82] sm:$0xff]
      %v1511 = vld [vmem:[%s961 + $0x92] sm:$0xff]
      %v1512 = vld [vmem:[%s961 + $0x9a] sm:$0xff]
      %v1513 = vld [vmem:[%s961 + $0xaa] sm:$0xff]
      %v1514 = vld [vmem:[%s961 + $0xb2] sm:$0xff]
      %v1515 = vld [vmem:[%s961 + $0xc2] sm:$0xff]
      %v1516 = vld [vmem:[%s961 + $0xca] sm:$0xff]
      %v1517 = vld [vmem:[%s961 + $0xda] sm:$0xff]
      %v1518 = vld [vmem:[%s961 + $0xe2] sm:$0xff]
      %v1519 = vld [vmem:[%s961 + $0xf2] sm:$0xff]
      %v1520 = vld [vmem:[%s961 + $0xfa] sm:$0xff]
      %v1521 = vld [vmem:[%s961 + $0x10a] sm:$0xff]
      %v1522 = vld [vmem:[%s961 + $0x112] sm:$0xff]
      %v1523 = vld [vmem:[%s961 + $0x122] sm:$0xff]
      %v1524 = vld [vmem:[%s961 + $0x12a] sm:$0xff]
      %v1525 = vld [vmem:[%s961 + $0x13a] sm:$0xff]
      %v1526 = vld [vmem:[%s961 + $0x142] sm:$0xff]
      %v1527 = vld [vmem:[%s961 + $0x152] sm:$0xff]
      %v1528 = vld [vmem:[%s961 + $0x15a] sm:$0xff]
      %v1529 = vld [vmem:[%s961 + $0x16a] sm:$0xff]
      %v1530 = vld [vmem:[%s961 + $0x172] sm:$0xff]
      %v1531 = vld [vmem:[%s4 + $0x5] sm:$0x1]
      %v1532 = vlaneseq
      %v1533 = vshrl.u32 %v1532, 7
      %v1534 = vsub.s32 0, %v1533
      %v1535 = vrot.slane %v1531, %v1534
      %v1536 = vmul.f32 %v1499, %v1535
      %v1537 = vmul.f32 %v1500, %v1535
      %v1538 = vmul.f32 %v1501, %v1535
      %v1539 = vmul.f32 %v1502, %v1535
      %v1540 = vmul.f32 %v1503, %v1535
      %v1541 = vmul.f32 %v1504, %v1535
      %v1542 = vmul.f32 %v1505, %v1535
      %v1543 = vmul.f32 %v1506, %v1535
      %v1544 = vmul.f32 %v1507, %v1535
      %v1545 = vmul.f32 %v1508, %v1535
      %v1546 = vmul.f32 %v1509, %v1535
      %v1547 = vmul.f32 %v1510, %v1535
      %v1548 = vmul.f32 %v1511, %v1535
      %v1549 = vmul.f32 %v1512, %v1535
      %v1550 = vmul.f32 %v1513, %v1535
      %v1551 = vmul.f32 %v1514, %v1535
      %v1552 = vmul.f32 %v1515, %v1535
      %v1553 = vmul.f32 %v1516, %v1535
      %v1554 = vmul.f32 %v1517, %v1535
      %v1555 = vmul.f32 %v1518, %v1535
      %v1556 = vmul.f32 %v1519, %v1535
      %v1557 = vmul.f32 %v1520, %v1535
      %v1558 = vmul.f32 %v1521, %v1535
      %v1559 = vmul.f32 %v1522, %v1535
      %v1560 = vmul.f32 %v1523, %v1535
      %v1561 = vmul.f32 %v1524, %v1535
      %v1562 = vmul.f32 %v1525, %v1535
      %v1563 = vmul.f32 %v1526, %v1535
      %v1564 = vmul.f32 %v1527, %v1535
      %v1565 = vmul.f32 %v1528, %v1535
      %v1566 = vmul.f32 %v1529, %v1535
      %v1567 = vmul.f32 %v1530, %v1535
      %v1568 = vadd.f32 %v1467, %v1536
      %v1569 = vadd.f32 %v1468, %v1537
      %v1570 = vadd.f32 %v1469, %v1538
      %v1571 = vadd.f32 %v1470, %v1539
      %v1572 = vadd.f32 %v1471, %v1540
      %v1573 = vadd.f32 %v1472, %v1541
      %v1574 = vadd.f32 %v1473, %v1542
      %v1575 = vadd.f32 %v1474, %v1543
      %v1576 = vadd.f32 %v1475, %v1544
      %v1577 = vadd.f32 %v1476, %v1545
      %v1578 = vadd.f32 %v1477, %v1546
      %v1579 = vadd.f32 %v1478, %v1547
      %v1580 = vadd.f32 %v1479, %v1548
      %v1581 = vadd.f32 %v1480, %v1549
      %v1582 = vadd.f32 %v1481, %v1550
      %v1583 = vadd.f32 %v1482, %v1551
      %v1584 = vadd.f32 %v1483, %v1552
      %v1585 = vadd.f32 %v1484, %v1553
      %v1586 = vadd.f32 %v1485, %v1554
      %v1587 = vadd.f32 %v1486, %v1555
      %v1588 = vadd.f32 %v1487, %v1556
      %v1589 = vadd.f32 %v1488, %v1557
      %v1590 = vadd.f32 %v1489, %v1558
      %v1591 = vadd.f32 %v1490, %v1559
      %v1592 = vadd.f32 %v1491, %v1560
      %v1593 = vadd.f32 %v1492, %v1561
      %v1594 = vadd.f32 %v1493, %v1562
      %v1595 = vadd.f32 %v1494, %v1563
      %v1596 = vadd.f32 %v1495, %v1564
      %v1597 = vadd.f32 %v1496, %v1565
      %v1598 = vadd.f32 %v1497, %v1566
      %v1599 = vadd.f32 %v1498, %v1567
      %s1600 = scalar_lea.vmem [#allocation2], 48
      %v1601 = vld [vmem:[%s1600] sm:$0xff]
      %v1602 = vld [vmem:[%s1600 + $0x8] sm:$0xff]
      %v1603 = vld [vmem:[%s1600 + $0x18] sm:$0xff]
      %v1604 = vld [vmem:[%s1600 + $0x20] sm:$0xff]
      %v1605 = vld [vmem:[%s1600 + $0x30] sm:$0xff]
      %v1606 = vld [vmem:[%s1600 + $0x38] sm:$0xff]
      %v1607 = vld [vmem:[%s1600 + $0x48] sm:$0xff]
      %v1608 = vld [vmem:[%s1600 + $0x50] sm:$0xff]
      %v1609 = vld [vmem:[%s1600 + $0x60] sm:$0xff]
      %v1610 = vld [vmem:[%s1600 + $0x68] sm:$0xff]
      %v1611 = vld [vmem:[%s1600 + $0x78] sm:$0xff]
      %v1612 = vld [vmem:[%s1600 + $0x80] sm:$0xff]
      %v1613 = vld [vmem:[%s1600 + $0x90] sm:$0xff]
      %v1614 = vld [vmem:[%s1600 + $0x98] sm:$0xff]
      %v1615 = vld [vmem:[%s1600 + $0xa8] sm:$0xff]
      %v1616 = vld [vmem:[%s1600 + $0xb0] sm:$0xff]
      %v1617 = vld [vmem:[%s1600 + $0xc0] sm:$0xff]
      %v1618 = vld [vmem:[%s1600 + $0xc8] sm:$0xff]
      %v1619 = vld [vmem:[%s1600 + $0xd8] sm:$0xff]
      %v1620 = vld [vmem:[%s1600 + $0xe0] sm:$0xff]
      %v1621 = vld [vmem:[%s1600 + $0xf0] sm:$0xff]
      %v1622 = vld [vmem:[%s1600 + $0xf8] sm:$0xff]
      %v1623 = vld [vmem:[%s1600 + $0x108] sm:$0xff]
      %v1624 = vld [vmem:[%s1600 + $0x110] sm:$0xff]
      %v1625 = vld [vmem:[%s1600 + $0x120] sm:$0xff]
      %v1626 = vld [vmem:[%s1600 + $0x128] sm:$0xff]
      %v1627 = vld [vmem:[%s1600 + $0x138] sm:$0xff]
      %v1628 = vld [vmem:[%s1600 + $0x140] sm:$0xff]
      %v1629 = vld [vmem:[%s1600 + $0x150] sm:$0xff]
      %v1630 = vld [vmem:[%s1600 + $0x158] sm:$0xff]
      %v1631 = vld [vmem:[%s1600 + $0x168] sm:$0xff]
      %v1632 = vld [vmem:[%s1600 + $0x170] sm:$0xff]
      %v1633 = vld [vmem:[%s4 + $0x6] sm:$0x1]
      %v1634 = vlaneseq
      %v1635 = vshrl.u32 %v1634, 7
      %v1636 = vsub.s32 0, %v1635
      %v1637 = vrot.slane %v1633, %v1636
      %v1638 = vmul.f32 %v1601, %v1637
      %v1639 = vmul.f32 %v1602, %v1637
      %v1640 = vmul.f32 %v1603, %v1637
      %v1641 = vmul.f32 %v1604, %v1637
      %v1642 = vmul.f32 %v1605, %v1637
      %v1643 = vmul.f32 %v1606, %v1637
      %v1644 = vmul.f32 %v1607, %v1637
      %v1645 = vmul.f32 %v1608, %v1637
      %v1646 = vmul.f32 %v1609, %v1637
      %v1647 = vmul.f32 %v1610, %v1637
      %v1648 = vmul.f32 %v1611, %v1637
      %v1649 = vmul.f32 %v1612, %v1637
      %v1650 = vmul.f32 %v1613, %v1637
      %v1651 = vmul.f32 %v1614, %v1637
      %v1652 = vmul.f32 %v1615, %v1637
      %v1653 = vmul.f32 %v1616, %v1637
      %v1654 = vmul.f32 %v1617, %v1637
      %v1655 = vmul.f32 %v1618, %v1637
      %v1656 = vmul.f32 %v1619, %v1637
      %v1657 = vmul.f32 %v1620, %v1637
      %v1658 = vmul.f32 %v1621, %v1637
      %v1659 = vmul.f32 %v1622, %v1637
      %v1660 = vmul.f32 %v1623, %v1637
      %v1661 = vmul.f32 %v1624, %v1637
      %v1662 = vmul.f32 %v1625, %v1637
      %v1663 = vmul.f32 %v1626, %v1637
      %v1664 = vmul.f32 %v1627, %v1637
      %v1665 = vmul.f32 %v1628, %v1637
      %v1666 = vmul.f32 %v1629, %v1637
      %v1667 = vmul.f32 %v1630, %v1637
      %v1668 = vmul.f32 %v1631, %v1637
      %v1669 = vmul.f32 %v1632, %v1637
      %v1670 = vadd.f32 %v1568, %v1638
      %v1671 = vadd.f32 %v1569, %v1639
      %v1672 = vadd.f32 %v1570, %v1640
      %v1673 = vadd.f32 %v1571, %v1641
      %v1674 = vadd.f32 %v1572, %v1642
      %v1675 = vadd.f32 %v1573, %v1643
      %v1676 = vadd.f32 %v1574, %v1644
      %v1677 = vadd.f32 %v1575, %v1645
      %v1678 = vadd.f32 %v1576, %v1646
      %v1679 = vadd.f32 %v1577, %v1647
      %v1680 = vadd.f32 %v1578, %v1648
      %v1681 = vadd.f32 %v1579, %v1649
      %v1682 = vadd.f32 %v1580, %v1650
      %v1683 = vadd.f32 %v1581, %v1651
      %v1684 = vadd.f32 %v1582, %v1652
      %v1685 = vadd.f32 %v1583, %v1653
      %v1686 = vadd.f32 %v1584, %v1654
      %v1687 = vadd.f32 %v1585, %v1655
      %v1688 = vadd.f32 %v1586, %v1656
      %v1689 = vadd.f32 %v1587, %v1657
      %v1690 = vadd.f32 %v1588, %v1658
      %v1691 = vadd.f32 %v1589, %v1659
      %v1692 = vadd.f32 %v1590, %v1660
      %v1693 = vadd.f32 %v1591, %v1661
      %v1694 = vadd.f32 %v1592, %v1662
      %v1695 = vadd.f32 %v1593, %v1663
      %v1696 = vadd.f32 %v1594, %v1664
      %v1697 = vadd.f32 %v1595, %v1665
      %v1698 = vadd.f32 %v1596, %v1666
      %v1699 = vadd.f32 %v1597, %v1667
      %v1700 = vadd.f32 %v1598, %v1668
      %v1701 = vadd.f32 %v1599, %v1669
      %v1702 = vld [vmem:[%s1600 + $0x1] sm:$0xff]
      %v1703 = vld [vmem:[%s1600 + $0x9] sm:$0xff]
      %v1704 = vld [vmem:[%s1600 + $0x19] sm:$0xff]
      %v1705 = vld [vmem:[%s1600 + $0x21] sm:$0xff]
      %v1706 = vld [vmem:[%s1600 + $0x31] sm:$0xff]
      %v1707 = vld [vmem:[%s1600 + $0x39] sm:$0xff]
      %v1708 = vld [vmem:[%s1600 + $0x49] sm:$0xff]
      %v1709 = vld [vmem:[%s1600 + $0x51] sm:$0xff]
      %v1710 = vld [vmem:[%s1600 + $0x61] sm:$0xff]
      %v1711 = vld [vmem:[%s1600 + $0x69] sm:$0xff]
      %v1712 = vld [vmem:[%s1600 + $0x79] sm:$0xff]
      %v1713 = vld [vmem:[%s1600 + $0x81] sm:$0xff]
      %v1714 = vld [vmem:[%s1600 + $0x91] sm:$0xff]
      %v1715 = vld [vmem:[%s1600 + $0x99] sm:$0xff]
      %v1716 = vld [vmem:[%s1600 + $0xa9] sm:$0xff]
      %v1717 = vld [vmem:[%s1600 + $0xb1] sm:$0xff]
      %v1718 = vld [vmem:[%s1600 + $0xc1] sm:$0xff]
      %v1719 = vld [vmem:[%s1600 + $0xc9] sm:$0xff]
      %v1720 = vld [vmem:[%s1600 + $0xd9] sm:$0xff]
      %v1721 = vld [vmem:[%s1600 + $0xe1] sm:$0xff]
      %v1722 = vld [vmem:[%s1600 + $0xf1] sm:$0xff]
      %v1723 = vld [vmem:[%s1600 + $0xf9] sm:$0xff]
      %v1724 = vld [vmem:[%s1600 + $0x109] sm:$0xff]
      %v1725 = vld [vmem:[%s1600 + $0x111] sm:$0xff]
      %v1726 = vld [vmem:[%s1600 + $0x121] sm:$0xff]
      %v1727 = vld [vmem:[%s1600 + $0x129] sm:$0xff]
      %v1728 = vld [vmem:[%s1600 + $0x139] sm:$0xff]
      %v1729 = vld [vmem:[%s1600 + $0x141] sm:$0xff]
      %v1730 = vld [vmem:[%s1600 + $0x151] sm:$0xff]
      %v1731 = vld [vmem:[%s1600 + $0x159] sm:$0xff]
      %v1732 = vld [vmem:[%s1600 + $0x169] sm:$0xff]
      %v1733 = vld [vmem:[%s1600 + $0x171] sm:$0xff]
      %v1734 = vld [vmem:[%s4 + $0x7] sm:$0x1]
      %v1735 = vlaneseq
      %v1736 = vshrl.u32 %v1735, 7
      %v1737 = vsub.s32 0, %v1736
      %v1738 = vrot.slane %v1734, %v1737
      %v1739 = vmul.f32 %v1702, %v1738
      %v1740 = vmul.f32 %v1703, %v1738
      %v1741 = vmul.f32 %v1704, %v1738
      %v1742 = vmul.f32 %v1705, %v1738
      %v1743 = vmul.f32 %v1706, %v1738
      %v1744 = vmul.f32 %v1707, %v1738
      %v1745 = vmul.f32 %v1708, %v1738
      %v1746 = vmul.f32 %v1709, %v1738
      %v1747 = vmul.f32 %v1710, %v1738
      %v1748 = vmul.f32 %v1711, %v1738
      %v1749 = vmul.f32 %v1712, %v1738
      %v1750 = vmul.f32 %v1713, %v1738
      %v1751 = vmul.f32 %v1714, %v1738
      %v1752 = vmul.f32 %v1715, %v1738
      %v1753 = vmul.f32 %v1716, %v1738
      %v1754 = vmul.f32 %v1717, %v1738
      %v1755 = vmul.f32 %v1718, %v1738
      %v1756 = vmul.f32 %v1719, %v1738
      %v1757 = vmul.f32 %v1720, %v1738
      %v1758 = vmul.f32 %v1721, %v1738
      %v1759 = vmul.f32 %v1722, %v1738
      %v1760 = vmul.f32 %v1723, %v1738
      %v1761 = vmul.f32 %v1724, %v1738
      %v1762 = vmul.f32 %v1725, %v1738
      %v1763 = vmul.f32 %v1726, %v1738
      %v1764 = vmul.f32 %v1727, %v1738
      %v1765 = vmul.f32 %v1728, %v1738
      %v1766 = vmul.f32 %v1729, %v1738
      %v1767 = vmul.f32 %v1730, %v1738
      %v1768 = vmul.f32 %v1731, %v1738
      %v1769 = vmul.f32 %v1732, %v1738
      %v1770 = vmul.f32 %v1733, %v1738
      %v1771 = vadd.f32 %v1670, %v1739
      %v1772 = vadd.f32 %v1671, %v1740
      %v1773 = vadd.f32 %v1672, %v1741
      %v1774 = vadd.f32 %v1673, %v1742
      %v1775 = vadd.f32 %v1674, %v1743
      %v1776 = vadd.f32 %v1675, %v1744
      %v1777 = vadd.f32 %v1676, %v1745
      %v1778 = vadd.f32 %v1677, %v1746
      %v1779 = vadd.f32 %v1678, %v1747
      %v1780 = vadd.f32 %v1679, %v1748
      %v1781 = vadd.f32 %v1680, %v1749
      %v1782 = vadd.f32 %v1681, %v1750
      %v1783 = vadd.f32 %v1682, %v1751
      %v1784 = vadd.f32 %v1683, %v1752
      %v1785 = vadd.f32 %v1684, %v1753
      %v1786 = vadd.f32 %v1685, %v1754
      %v1787 = vadd.f32 %v1686, %v1755
      %v1788 = vadd.f32 %v1687, %v1756
      %v1789 = vadd.f32 %v1688, %v1757
      %v1790 = vadd.f32 %v1689, %v1758
      %v1791 = vadd.f32 %v1690, %v1759
      %v1792 = vadd.f32 %v1691, %v1760
      %v1793 = vadd.f32 %v1692, %v1761
      %v1794 = vadd.f32 %v1693, %v1762
      %v1795 = vadd.f32 %v1694, %v1763
      %v1796 = vadd.f32 %v1695, %v1764
      %v1797 = vadd.f32 %v1696, %v1765
      %v1798 = vadd.f32 %v1697, %v1766
      %v1799 = vadd.f32 %v1698, %v1767
      %v1800 = vadd.f32 %v1699, %v1768
      %v1801 = vadd.f32 %v1700, %v1769
      %v1802 = vadd.f32 %v1701, %v1770
      %v1803 = vld [vmem:[%s1600 + $0x2] sm:$0xff]
      %v1804 = vld [vmem:[%s1600 + $0xa] sm:$0xff]
      %v1805 = vld [vmem:[%s1600 + $0x1a] sm:$0xff]
      %v1806 = vld [vmem:[%s1600 + $0x22] sm:$0xff]
      %v1807 = vld [vmem:[%s1600 + $0x32] sm:$0xff]
      %v1808 = vld [vmem:[%s1600 + $0x3a] sm:$0xff]
      %v1809 = vld [vmem:[%s1600 + $0x4a] sm:$0xff]
      %v1810 = vld [vmem:[%s1600 + $0x52] sm:$0xff]
      %v1811 = vld [vmem:[%s1600 + $0x62] sm:$0xff]
      %v1812 = vld [vmem:[%s1600 + $0x6a] sm:$0xff]
      %v1813 = vld [vmem:[%s1600 + $0x7a] sm:$0xff]
      %v1814 = vld [vmem:[%s1600 + $0x82] sm:$0xff]
      %v1815 = vld [vmem:[%s1600 + $0x92] sm:$0xff]
      %v1816 = vld [vmem:[%s1600 + $0x9a] sm:$0xff]
      %v1817 = vld [vmem:[%s1600 + $0xaa] sm:$0xff]
      %v1818 = vld [vmem:[%s1600 + $0xb2] sm:$0xff]
      %v1819 = vld [vmem:[%s1600 + $0xc2] sm:$0xff]
      %v1820 = vld [vmem:[%s1600 + $0xca] sm:$0xff]
      %v1821 = vld [vmem:[%s1600 + $0xda] sm:$0xff]
      %v1822 = vld [vmem:[%s1600 + $0xe2] sm:$0xff]
      %v1823 = vld [vmem:[%s1600 + $0xf2] sm:$0xff]
      %v1824 = vld [vmem:[%s1600 + $0xfa] sm:$0xff]
      %v1825 = vld [vmem:[%s1600 + $0x10a] sm:$0xff]
      %v1826 = vld [vmem:[%s1600 + $0x112] sm:$0xff]
      %v1827 = vld [vmem:[%s1600 + $0x122] sm:$0xff]
      %v1828 = vld [vmem:[%s1600 + $0x12a] sm:$0xff]
      %v1829 = vld [vmem:[%s1600 + $0x13a] sm:$0xff]
      %v1830 = vld [vmem:[%s1600 + $0x142] sm:$0xff]
      %v1831 = vld [vmem:[%s1600 + $0x152] sm:$0xff]
      %v1832 = vld [vmem:[%s1600 + $0x15a] sm:$0xff]
      %v1833 = vld [vmem:[%s1600 + $0x16a] sm:$0xff]
      %v1834 = vld [vmem:[%s1600 + $0x172] sm:$0xff]
      %v1835 = vld [vmem:[%s4 + $0x8] sm:$0x1]
      %v1836 = vlaneseq
      %v1837 = vshrl.u32 %v1836, 7
      %v1838 = vsub.s32 0, %v1837
      %v1839 = vrot.slane %v1835, %v1838
      %v1840 = vmul.f32 %v1803, %v1839
      %v1841 = vmul.f32 %v1804, %v1839
      %v1842 = vmul.f32 %v1805, %v1839
      %v1843 = vmul.f32 %v1806, %v1839
      %v1844 = vmul.f32 %v1807, %v1839
      %v1845 = vmul.f32 %v1808, %v1839
      %v1846 = vmul.f32 %v1809, %v1839
      %v1847 = vmul.f32 %v1810, %v1839
      %v1848 = vmul.f32 %v1811, %v1839
      %v1849 = vmul.f32 %v1812, %v1839
      %v1850 = vmul.f32 %v1813, %v1839
      %v1851 = vmul.f32 %v1814, %v1839
      %v1852 = vmul.f32 %v1815, %v1839
      %v1853 = vmul.f32 %v1816, %v1839
      %v1854 = vmul.f32 %v1817, %v1839
      %v1855 = vmul.f32 %v1818, %v1839
      %v1856 = vmul.f32 %v1819, %v1839
      %v1857 = vmul.f32 %v1820, %v1839
      %v1858 = vmul.f32 %v1821, %v1839
      %v1859 = vmul.f32 %v1822, %v1839
      %v1860 = vmul.f32 %v1823, %v1839
      %v1861 = vmul.f32 %v1824, %v1839
      %v1862 = vmul.f32 %v1825, %v1839
      %v1863 = vmul.f32 %v1826, %v1839
      %v1864 = vmul.f32 %v1827, %v1839
      %v1865 = vmul.f32 %v1828, %v1839
      %v1866 = vmul.f32 %v1829, %v1839
      %v1867 = vmul.f32 %v1830, %v1839
      %v1868 = vmul.f32 %v1831, %v1839
      %v1869 = vmul.f32 %v1832, %v1839
      %v1870 = vmul.f32 %v1833, %v1839
      %v1871 = vmul.f32 %v1834, %v1839
      %v1872 = vadd.f32 %v1771, %v1840
      %v1873 = vadd.f32 %v1772, %v1841
      %v1874 = vadd.f32 %v1773, %v1842
      %v1875 = vadd.f32 %v1774, %v1843
      %v1876 = vadd.f32 %v1775, %v1844
      %v1877 = vadd.f32 %v1776, %v1845
      %v1878 = vadd.f32 %v1777, %v1846
      %v1879 = vadd.f32 %v1778, %v1847
      %v1880 = vadd.f32 %v1779, %v1848
      %v1881 = vadd.f32 %v1780, %v1849
      %v1882 = vadd.f32 %v1781, %v1850
      %v1883 = vadd.f32 %v1782, %v1851
      %v1884 = vadd.f32 %v1783, %v1852
      %v1885 = vadd.f32 %v1784, %v1853
      %v1886 = vadd.f32 %v1785, %v1854
      %v1887 = vadd.f32 %v1786, %v1855
      %v1888 = vadd.f32 %v1787, %v1856
      %v1889 = vadd.f32 %v1788, %v1857
      %v1890 = vadd.f32 %v1789, %v1858
      %v1891 = vadd.f32 %v1790, %v1859
      %v1892 = vadd.f32 %v1791, %v1860
      %v1893 = vadd.f32 %v1792, %v1861
      %v1894 = vadd.f32 %v1793, %v1862
      %v1895 = vadd.f32 %v1794, %v1863
      %v1896 = vadd.f32 %v1795, %v1864
      %v1897 = vadd.f32 %v1796, %v1865
      %v1898 = vadd.f32 %v1797, %v1866
      %v1899 = vadd.f32 %v1798, %v1867
      %v1900 = vadd.f32 %v1799, %v1868
      %v1901 = vadd.f32 %v1800, %v1869
      %v1902 = vadd.f32 %v1801, %v1870
      %v1903 = vadd.f32 %v1802, %v1871
      %v1904 = vld [vmem:[%s5] sm:$0x1]
      %v1906 = vlaneseq
      %v1907 = vshrl.u32 %v1906, 7
      %v1908 = vsub.s32 0, %v1907
      %v1909 = vrot.slane %v1904, %v1908
      %v1911 = vmul.f32 %v1872, %v1909
      %v1912 = vmul.f32 %v1873, %v1909
      %v1913 = vmul.f32 %v1874, %v1909
      %v1914 = vmul.f32 %v1875, %v1909
      %v1915 = vmul.f32 %v1876, %v1909
      %v1916 = vmul.f32 %v1877, %v1909
      %v1917 = vmul.f32 %v1878, %v1909
      %v1918 = vmul.f32 %v1879, %v1909
      %v1919 = vmul.f32 %v1880, %v1909
      %v1920 = vmul.f32 %v1881, %v1909
      %v1921 = vmul.f32 %v1882, %v1909
      %v1922 = vmul.f32 %v1883, %v1909
      %v1923 = vmul.f32 %v1884, %v1909
      %v1924 = vmul.f32 %v1885, %v1909
      %v1925 = vmul.f32 %v1886, %v1909
      %v1926 = vmul.f32 %v1887, %v1909
      %v1927 = vmul.f32 %v1888, %v1909
      %v1928 = vmul.f32 %v1889, %v1909
      %v1929 = vmul.f32 %v1890, %v1909
      %v1930 = vmul.f32 %v1891, %v1909
      %v1931 = vmul.f32 %v1892, %v1909
      %v1932 = vmul.f32 %v1893, %v1909
      %v1933 = vmul.f32 %v1894, %v1909
      %v1934 = vmul.f32 %v1895, %v1909
      %v1935 = vmul.f32 %v1896, %v1909
      %v1936 = vmul.f32 %v1897, %v1909
      %v1937 = vmul.f32 %v1898, %v1909
      %v1938 = vmul.f32 %v1899, %v1909
      %v1939 = vmul.f32 %v1900, %v1909
      %v1940 = vmul.f32 %v1901, %v1909
      %v1941 = vmul.f32 %v1902, %v1909
      %v1942 = vmul.f32 %v1903, %v1909
      %v1943 = vld [vmem:[%s6] sm:$0x1]
      %v1945 = vlaneseq
      %v1946 = vshrl.u32 %v1945, 7
      %v1947 = vsub.s32 0, %v1946
      %v1948 = vrot.slane %v1943, %v1947
      %v1950 = vadd.f32 %v1911, %v1948
      %v1951 = vadd.f32 %v1912, %v1948
      %v1952 = vadd.f32 %v1913, %v1948
      %v1953 = vadd.f32 %v1914, %v1948
      %v1954 = vadd.f32 %v1915, %v1948
      %v1955 = vadd.f32 %v1916, %v1948
      %v1956 = vadd.f32 %v1917, %v1948
      %v1957 = vadd.f32 %v1918, %v1948
      %v1958 = vadd.f32 %v1919, %v1948
      %v1959 = vadd.f32 %v1920, %v1948
      %v1960 = vadd.f32 %v1921, %v1948
      %v1961 = vadd.f32 %v1922, %v1948
      %v1962 = vadd.f32 %v1923, %v1948
      %v1963 = vadd.f32 %v1924, %v1948
      %v1964 = vadd.f32 %v1925, %v1948
      %v1965 = vadd.f32 %v1926, %v1948
      %v1966 = vadd.f32 %v1927, %v1948
      %v1967 = vadd.f32 %v1928, %v1948
      %v1968 = vadd.f32 %v1929, %v1948
      %v1969 = vadd.f32 %v1930, %v1948
      %v1970 = vadd.f32 %v1931, %v1948
      %v1971 = vadd.f32 %v1932, %v1948
      %v1972 = vadd.f32 %v1933, %v1948
      %v1973 = vadd.f32 %v1934, %v1948
      %v1974 = vadd.f32 %v1935, %v1948
      %v1975 = vadd.f32 %v1936, %v1948
      %v1976 = vadd.f32 %v1937, %v1948
      %v1977 = vadd.f32 %v1938, %v1948
      %v1978 = vadd.f32 %v1939, %v1948
      %v1979 = vadd.f32 %v1940, %v1948
      %v1980 = vadd.f32 %v1941, %v1948
      %v1981 = vadd.f32 %v1942, %v1948
      %v1982 = vmax.f32 %v1950, 0.0
      %v1983 = vmax.f32 %v1951, 0.0
      %v1984 = vmax.f32 %v1952, 0.0
      %v1985 = vmax.f32 %v1953, 0.0
      %v1986 = vmax.f32 %v1954, 0.0
      %v1987 = vmax.f32 %v1955, 0.0
      %v1988 = vmax.f32 %v1956, 0.0
      %v1989 = vmax.f32 %v1957, 0.0
      %v1990 = vmax.f32 %v1958, 0.0
      %v1991 = vmax.f32 %v1959, 0.0
      %v1992 = vmax.f32 %v1960, 0.0
      %v1993 = vmax.f32 %v1961, 0.0
      %v1994 = vmax.f32 %v1962, 0.0
      %v1995 = vmax.f32 %v1963, 0.0
      %v1996 = vmax.f32 %v1964, 0.0
      %v1997 = vmax.f32 %v1965, 0.0
      %v1998 = vmax.f32 %v1966, 0.0
      %v1999 = vmax.f32 %v1967, 0.0
      %v2000 = vmax.f32 %v1968, 0.0
      %v2001 = vmax.f32 %v1969, 0.0
      %v2002 = vmax.f32 %v1970, 0.0
      %v2003 = vmax.f32 %v1971, 0.0
      %v2004 = vmax.f32 %v1972, 0.0
      %v2005 = vmax.f32 %v1973, 0.0
      %v2006 = vmax.f32 %v1974, 0.0
      %v2007 = vmax.f32 %v1975, 0.0
      %v2008 = vmax.f32 %v1976, 0.0
      %v2009 = vmax.f32 %v1977, 0.0
      %v2010 = vmax.f32 %v1978, 0.0
      %v2011 = vmax.f32 %v1979, 0.0
      %v2012 = vmax.f32 %v1980, 0.0
      %v2013 = vmax.f32 %v1981, 0.0
      %v2014 = vmin.f32 %v1982, 6.0
      %v2015 = vmin.f32 %v1983, 6.0
      %v2016 = vmin.f32 %v1984, 6.0
      %v2017 = vmin.f32 %v1985, 6.0
      %v2018 = vmin.f32 %v1986, 6.0
      %v2019 = vmin.f32 %v1987, 6.0
      %v2020 = vmin.f32 %v1988, 6.0
      %v2021 = vmin.f32 %v1989, 6.0
      %v2022 = vmin.f32 %v1990, 6.0
      %v2023 = vmin.f32 %v1991, 6.0
      %v2024 = vmin.f32 %v1992, 6.0
      %v2025 = vmin.f32 %v1993, 6.0
      %v2026 = vmin.f32 %v1994, 6.0
      %v2027 = vmin.f32 %v1995, 6.0
      %v2028 = vmin.f32 %v1996, 6.0
      %v2029 = vmin.f32 %v1997, 6.0
      %v2030 = vmin.f32 %v1998, 6.0
      %v2031 = vmin.f32 %v1999, 6.0
      %v2032 = vmin.f32 %v2000, 6.0
      %v2033 = vmin.f32 %v2001, 6.0
      %v2034 = vmin.f32 %v2002, 6.0
      %v2035 = vmin.f32 %v2003, 6.0
      %v2036 = vmin.f32 %v2004, 6.0
      %v2037 = vmin.f32 %v2005, 6.0
      %v2038 = vmin.f32 %v2006, 6.0
      %v2039 = vmin.f32 %v2007, 6.0
      %v2040 = vmin.f32 %v2008, 6.0
      %v2041 = vmin.f32 %v2009, 6.0
      %v2042 = vmin.f32 %v2010, 6.0
      %v2043 = vmin.f32 %v2011, 6.0
      %v2044 = vmin.f32 %v2012, 6.0
      %v2045 = vmin.f32 %v2013, 6.0
      %v2046 = vld [vmem:[%s7] sm:$0xff]
      %v2047 = vld [vmem:[%s7 + $0x8] sm:$0xff]
      %v2049 = vsel %vm905, %v2046, 0
      %v2052 = vsel %vm905, %v2047, 0
      %v2055 = vsel %vm905, %v2014, 0
      %v2058 = vsel %vm905, %v2015, 0
      %v2061 = vsel %vm905, %v2016, 0
      %v2064 = vsel %vm905, %v2017, 0
      %v2067 = vsel %vm905, %v2018, 0
      %v2070 = vsel %vm905, %v2019, 0
      %v2073 = vsel %vm905, %v2020, 0
      %v2076 = vsel %vm905, %v2021, 0
      %v2079 = vsel %vm905, %v2022, 0
      %v2082 = vsel %vm905, %v2023, 0
      %v2085 = vsel %vm905, %v2024, 0
      %v2088 = vsel %vm905, %v2025, 0
      %v2091 = vsel %vm905, %v2026, 0
      %v2094 = vsel %vm905, %v2027, 0
      %v2097 = vsel %vm905, %v2028, 0
      %v2100 = vsel %vm905, %v2029, 0
      %v2103 = vsel %vm905, %v2030, 0
      %v2106 = vsel %vm905, %v2031, 0
      %v2109 = vsel %vm905, %v2032, 0
      %v2112 = vsel %vm905, %v2033, 0
      %v2115 = vsel %vm905, %v2034, 0
      %v2118 = vsel %vm905, %v2035, 0
      %v2121 = vsel %vm905, %v2036, 0
      %v2124 = vsel %vm905, %v2037, 0
      %v2127 = vsel %vm905, %v2038, 0
      %v2130 = vsel %vm905, %v2039, 0
      %v2133 = vsel %vm905, %v2040, 0
      %v2136 = vsel %vm905, %v2041, 0
      %v2139 = vsel %vm905, %v2042, 0
      %v2142 = vsel %vm905, %v2043, 0
      %v2145 = vsel %vm905, %v2044, 0
      %v2148 = vsel %vm905, %v2045, 0
      %2150 = vmatprep.subr.mxu0 0.0
      %2151 = vmatpush1.xpose.msra.mxu0 %v2055
      %2152 = vmatprep.subr.mxu0 0.0
      %2153 = vmatpush1.xpose.msra.mxu0 %v2058
      %2154 = vmatprep.subr.mxu0 0.0
      %2155 = vmatpush1.xpose.msra.mxu0 %v2061
      %2156 = vmatprep.subr.mxu0 0.0
      %2157 = vmatpush1.xpose.msra.mxu0 %v2064
      %2158 = vmatprep.subr.mxu0 0.0
      %2159 = vmatpush1.xpose.msra.mxu0 %v2067
      %2160 = vmatprep.subr.mxu0 0.0
      %2161 = vmatpush1.xpose.msra.mxu0 %v2070
      %2162 = vmatprep.subr.mxu0 0.0
      %2163 = vmatpush1.xpose.msra.mxu0 %v2073
      %2164 = vmatprep.subr.mxu0 0.0
      %2165 = vmatpush1.xpose.msra.mxu0 %v2076
      %2166 = vmatprep.subr.mxu0 0.0
      %2167 = vmatpush1.xpose.msra.mxu0 %v2079
      %2168 = vmatprep.subr.mxu0 0.0
      %2169 = vmatpush1.xpose.msra.mxu0 %v2082
      %2170 = vmatprep.subr.mxu0 0.0
      %2171 = vmatpush1.xpose.msra.mxu0 %v2085
      %2172 = vmatprep.subr.mxu0 0.0
      %2173 = vmatpush1.xpose.msra.mxu0 %v2088
      %2174 = vmatprep.subr.mxu0 0.0
      %2175 = vmatpush1.xpose.msra.mxu0 %v2091
      %2176 = vmatprep.subr.mxu0 0.0
      %2177 = vmatpush1.xpose.msra.mxu0 %v2094
      %2178 = vmatprep.subr.mxu0 0.0
      %2179 = vmatpush1.xpose.msra.mxu0 %v2097
      %2180 = vmatprep.subr.mxu0 0.0
      %2181 = vmatpush1.xpose.msra.mxu0 %v2100
      %2182 = vmatprep.subr.mxu0 0.0
      %2183 = vmatpush1.xpose.msra.mxu0 %v2103
      %2184 = vmatprep.subr.mxu0 0.0
      %2185 = vmatpush1.xpose.msra.mxu0 %v2106
      %2186 = vmatprep.subr.mxu0 0.0
      %2187 = vmatpush1.xpose.msra.mxu0 %v2109
      %2188 = vmatprep.subr.mxu0 0.0
      %2189 = vmatpush1.xpose.msra.mxu0 %v2112
      %2190 = vmatprep.subr.mxu0 0.0
      %2191 = vmatpush1.xpose.msra.mxu0 %v2115
      %2192 = vmatprep.subr.mxu0 0.0
      %2193 = vmatpush1.xpose.msra.mxu0 %v2118
      %2194 = vmatprep.subr.mxu0 0.0
      %2195 = vmatpush1.xpose.msra.mxu0 %v2121
      %2196 = vmatprep.subr.mxu0 0.0
      %2197 = vmatpush1.xpose.msra.mxu0 %v2124
      %2198 = vmatprep.subr.mxu0 0.0
      %2199 = vmatpush1.xpose.msra.mxu0 %v2127
      %2200 = vmatprep.subr.mxu0 0.0
      %2201 = vmatpush1.xpose.msra.mxu0 %v2130
      %2202 = vmatprep.subr.mxu0 0.0
      %2203 = vmatpush1.xpose.msra.mxu0 %v2133
      %2204 = vmatprep.subr.mxu0 0.0
      %2205 = vmatpush1.xpose.msra.mxu0 %v2136
      %2206 = vmatprep.subr.mxu0 0.0
      %2207 = vmatpush1.xpose.msra.mxu0 %v2139
      %2208 = vmatprep.subr.mxu0 0.0
      %2209 = vmatpush1.xpose.msra.mxu0 %v2142
      %2210 = vmatprep.subr.mxu0 0.0
      %2211 = vmatpush1.xpose.msra.mxu0 %v2145
      %2212 = vmatprep.subr.mxu0 0.0
      %2213 = vmatpush1.xpose.msra.mxu0 %v2148
      %2214 = vmatprep.mubr.f32.mxu0 0.0
      %2215 = vmatmul.mubr.f32.gmra.mrb[0].mxu0 %v2049
      %v2216 = vpop.f32.mrb[0].mxu0
      %v2217 = vadd.f32 0.0, %v2216
      %v2218 = vpop.f32.mrb[0].mxu0
      %v2219 = vadd.f32 0.0, %v2218
      %2220 = vmatprep.mubr.f32.mxu0 0.0
      %2221 = vmatmul.mubr.f32.gmra.mrb[0].mxu0 %v2052
      %v2222 = vpop.f32.mrb[0].mxu0
      %v2223 = vadd.f32 0.0, %v2222
      %v2224 = vpop.f32.mrb[0].mxu0
      %v2225 = vadd.f32 0.0, %v2224
      %2226 = vdwg.mxu0
      %v2227 = vld [vmem:[%s8] sm:$0xff]
      %v2228 = vld [vmem:[%s8 + $0x8] sm:$0xff]
      %2230 = vset.pattern.permute.xlu0 0
      %2231 = vperm.xlu0 %2230, %v2227
      %v2232 = vpop.permute.xlu0 %2231
      %2235 = vset.pattern.permute.xlu0 0
      %2236 = vperm.xlu0 %2235, %v2228
      %v2237 = vpop.permute.xlu0 %2236
      %v2239 = vmul.f32 %v2217, %v2232
      %v2240 = vmul.f32 %v2219, %v2232
      %v2241 = vmul.f32 %v2223, %v2237
      %v2242 = vmul.f32 %v2225, %v2237
      %v2243 = vld [vmem:[%s9] sm:$0xff]
      %v2244 = vld [vmem:[%s9 + $0x8] sm:$0xff]
      %2246 = vset.pattern.permute.xlu0 0
      %2247 = vperm.xlu0 %2246, %v2243
      %v2248 = vpop.permute.xlu0 %2247
      %2251 = vset.pattern.permute.xlu0 0
      %2252 = vperm.xlu0 %2251, %v2244
      %v2253 = vpop.permute.xlu0 %2252
      %v2255 = vadd.f32 %v2239, %v2248
      %v2256 = vadd.f32 %v2240, %v2248
      %v2257 = vadd.f32 %v2241, %v2253
      %v2258 = vadd.f32 %v2242, %v2253
      %v2259 = vld [vmem:[%s401] sm:$0xff]
      %v2260 = vld [vmem:[%s401 + $0x8] sm:$0xff]
      %v2261 = vld [vmem:[%s401 + $0x10] sm:$0xff]
      %v2262 = vld [vmem:[%s401 + $0x18] sm:$0xff]
      %v2263 = vadd.f32 %v2255, %v2259
      %v2264 = vadd.f32 %v2256, %v2260
      %v2265 = vadd.f32 %v2257, %v2261
      %v2266 = vadd.f32 %v2258, %v2262
      %2267 = vst [vmem:[%s406] sm:$0xff] %v2263
      %2268 = vst [vmem:[%s406 + $0x8] sm:$0xff] %v2264
      %2269 = vst [vmem:[%s406 + $0x10] sm:$0xff] %v2265
      %2270 = vst [vmem:[%s406 + $0x18] sm:$0xff] %v2266
      %p2271 = scmp.lt.s32.totalorder %s22, 1
      %s2272 = scalar_select %p2271, %s22, 1
      %s2273 = smul.addr %s2272, 4
      %s2274 = smul.addr %s2273, 8
      %s2275 = scalar_lea.vmem %s11, %s2274
      // Predicated region
      $region65: #{inverted_residual_forward.1} parent=63 // pred_check
        %p2276 = pneg %p281
      $region66: #{inverted_residual_forward.1} parent=63 // pred_check_branch
        %2278 = sbr.rel (%p2276) target = $region68
      $region67: #{inverted_residual_forward.1} parent=63 // pred_region
        _
      $region68: #{inverted_residual_forward.1} parent=63 // pred_fallthru
        _
    $region64: #{inverted_residual_forward.1} parent=5 // pred_fallthru
      _
    %p2279 = scmp.le.s32.totalorder 2, %s17
    // Predicated region
    $region69: #{inverted_residual_forward.1} parent=5 // pred_check
      %p2280 = pneg %p2279
    $region70: #{inverted_residual_forward.1} parent=5 // pred_check_branch
      %2282 = sbr.rel (%p2280) target = $region72
    $region71: #{inverted_residual_forward.1} parent=5 // pred_region
      %s2283 = ssub.s32 %s17, 2
      // Predicated region
      $region73: #{inverted_residual_forward.1} parent=71 // pred_check
        %p2284 = pneg %p287
      $region74: #{inverted_residual_forward.1} parent=71 // pred_check_branch
        %2286 = sbr.rel (%p2284) target = $region76
      $region75: #{inverted_residual_forward.1} parent=71 // pred_region
        %p2287 = scmp.lt.s32.totalorder %s23, 1
        %s2288 = scalar_select %p2287, %s23, 1
        %s2289 = smul.addr %s2288, 4
        %s2290 = smul.addr %s2289, 8
        %s2291 = scalar_lea.vmem %s11, %s2290
      $region76: #{inverted_residual_forward.1} parent=71 // pred_fallthru
        _
    $region72: #{inverted_residual_forward.1} parent=5 // pred_fallthru
      _
  $region6: #{inverted_residual_forward.1} parent=0 // loop_footer
    %s21 = sadd.s32 1, %s17
  $region7: #{inverted_residual_forward.1} parent=0 // loop_footer_branch
    %16 = sbr.rel target = $region3
  $region8: #{inverted_residual_forward.1} parent=0 // loop_exit
    _

</llo_original>
